<compile_context>
chip_gen: v7x
topology: tpu7x:2x2x1
jax: 0.10.0
libtpu: 0.0.40
codegen_flags: <defaults>
</compile_context>

<pallas_src>
import jax
import jax.numpy as jnp
from jax.experimental import pallas as pl
from jax.experimental.pallas import tpu as pltpu


def _round_up(x, m):
    return (x + m - 1) // m * m


def _softplus(z):
    # numerically stable softplus
    return jnp.maximum(z, 0.0) + jnp.log1p(jnp.exp(-jnp.abs(z)))


def _silu(x):
    # SiLU via sigmoid(x) = 0.5*(1 + tanh(x/2)): one EUP push per element.
    # Uses only weakly-typed constants so it works in f32 or bf16.
    return x * (0.5 * (1.0 + jnp.tanh(0.5 * x)))


def _make_efnet_kernel(cf_chunk, n_cf_chunks, bf16_act):
    def efnet_kernel(scal_ref,      # SMEM (3,)  f32: [pos_weight, b_fc, 1/P]
                     tgt_ref,       # SMEM (B,)  f32 targets
                     patches_ref,   # VMEM (1, TILE_P, KP) bf16 — streamed per grid step
                     wstem_ref,     # VMEM (KP, C1) bf16        — resident
                     whead_ref,     # VMEM (C1, CF) bf16        — resident
                     wfc_ref,       # VMEM (1, CF)  f32         — resident
                     yhat_ref,      # VMEM (1,1,1)  f32 out     — per-sample block
                     loss_ref,      # VMEM (1,1,1)  f32 out     — per-sample BCE term
                     acc_ref):      # VMEM (1, CF)  f32 scratch — pooled-sum accumulator
        b = pl.program_id(0)
        t = pl.program_id(1)
        n_t = pl.num_programs(1)

        @pl.when(t == 0)
        def _():
            acc_ref[...] = jnp.zeros_like(acc_ref)

        # --- stem 3x3/s2 conv as im2col matmul (bf16 MXU) -> SiLU (f32) ---
        x = patches_ref[0]                                               # (TILE_P, KP) bf16
        h1 = jnp.dot(x, wstem_ref[...], preferred_element_type=jnp.float32)
        h1 = _silu(h1)                                                   # (TILE_P, C1) f32
        h1_bf = h1.astype(jnp.bfloat16)

        tile = x.shape[0]
        if bf16_act:
            # resident-within-step ones row: column reduce runs on the MXU (has slack at K=32)
            ones_row = jnp.ones((1, tile), jnp.bfloat16)

        # --- head 1x1 conv -> SiLU -> column-sum, fused per CF chunk ---
        # avoids materializing the full (tile, 1280) f32 activation
        for c in range(n_cf_chunks):
            lo = c * cf_chunk
            hi = lo + cf_chunk
            h2 = jnp.dot(h1_bf, whead_ref[:, lo:hi],
                         preferred_element_type=jnp.float32)             # (TILE_P, chunk) f32
            if bf16_act:
                h2b = _silu(h2.astype(jnp.bfloat16))                     # bf16 VPU/EUP (v6e/v7x)
                acc_ref[:, lo:hi] += jnp.dot(ones_row, h2b,
                                             preferred_element_type=jnp.float32)
            else:
                acc_ref[:, lo:hi] += jnp.sum(_silu(h2), axis=0, keepdims=True)

        # --- finalize this batch element on its last spatial tile ---
        @pl.when(t == n_t - 1)
        def _():
            pooled = acc_ref[...] * scal_ref[2]                          # (1, CF) mean over P
            # fc: Linear(1280, 1) as a VPU/XLU reduction (avoids degenerate N=1 MXU matmul)
            yh = jnp.sum(pooled * wfc_ref[...], axis=1, keepdims=True) + scal_ref[1]  # (1,1)
            yhat_ref[...] = yh.reshape(1, 1, 1)

            # per-sample BCEWithLogitsLoss(pos_weight=wp) term; mean over B done in wrapper
            wp = scal_ref[0]
            tv = tgt_ref[b]
            per = wp * tv * _softplus(-yh) + (1.0 - tv) * _softplus(yh)  # (1, 1)
            loss_ref[...] = per.reshape(1, 1, 1)

    return efnet_kernel


def efnet_forward(images_nchw, targets, params, pos_weight, *, tile_p=4096):
    """images_nchw: (B, 3, H, W) float32; targets: (B,) float32."""
    B, Cin, H, W = images_nchw.shape

    # chip-aware knobs (bf16 activation math only where VPU/EUP support it)
    kind = ""
    try:
        kind = jax.devices()[0].device_kind.lower()
    except Exception:
        pass
    bf16_act = ("v6" in kind) or ("v7" in kind)
    if "v7" in kind:
        vmem_limit = 52 * 1024 * 1024          # 64 MiB physical per TC
    elif ("v5" in kind) or ("v6" in kind):
        vmem_limit = 96 * 1024 * 1024          # 128 MiB physical
    else:
        vmem_limit = 48 * 1024 * 1024

    # NCHW -> NHWC, cast to bf16 BEFORE im2col so the 9x-expanded copy is half-size in HBM
    x = jnp.transpose(images_nchw, (0, 2, 3, 1)).astype(jnp.bfloat16)

    # im2col for the 3x3 / stride-2 / pad-1 stem conv (plain-JAX glue)
    Hout, Wout = H // 2, W // 2
    P = Hout * Wout
    xp = jnp.pad(x, ((0, 0), (1, 1), (1, 1), (0, 0)))
    cols = []
    for di in range(3):
        for dj in range(3):
            cols.append(xp[:, di:di + 2 * Hout:2, dj:dj + 2 * Wout:2, :])  # (B,Hout,Wout,Cin)
    patches = jnp.concatenate(cols, axis=-1).reshape(B, P, 9 * Cin)

    # pad the im2col K dim (27 -> 32): aligned MXU K, unmasked packed loads, free numerically
    K = 9 * Cin
    KP = _round_up(K, 32)
    patches = jnp.pad(patches, ((0, 0), (0, 0), (0, KP - K)))
    w_stem = jnp.pad(params["w_stem"], ((0, KP - K), (0, 0)))

    # tile the spatial/row dimension; zero-padded rows contribute 0 to the pooled sum
    tile = min(tile_p, _round_up(P, 16))
    tile = _round_up(tile, 16)                     # bf16 sublane-pack friendly
    P_pad = _round_up(P, tile)
    patches = jnp.pad(patches, ((0, 0), (0, P_pad - P), (0, 0)))
    n_t = P_pad // tile

    C1 = w_stem.shape[1]
    CF = params["w_head"].shape[1]

    # CF chunking for the fused head matmul -> SiLU -> pool reduction
    if CF % 256 == 0:
        cf_chunk = 256
    elif CF % 128 == 0:
        cf_chunk = 128
    else:
        cf_chunk = CF
    n_cf = CF // cf_chunk

    patches_bf = patches.astype(jnp.bfloat16)
    wstem_bf = w_stem.astype(jnp.bfloat16)
    whead_bf = params["w_head"].astype(jnp.bfloat16)
    wfc = params["w_fc"].reshape(1, CF).astype(jnp.float32)

    scal = jnp.stack([
        jnp.asarray(pos_weight, jnp.float32),                # wp
        params["b_fc"].reshape(()).astype(jnp.float32),      # fc bias
        jnp.asarray(1.0 / P, jnp.float32),                   # 1 / (real spatial positions)
    ])
    tgt = targets.astype(jnp.float32).reshape(B)             # targets.view(-1,1).type_as(yhat)

    kernel = _make_efnet_kernel(cf_chunk, n_cf, bf16_act)

    yhat3, loss3 = pl.pallas_call(
        kernel,
        out_shape=(
            jax.ShapeDtypeStruct((B, 1, 1), jnp.float32),     # per-sample yhat
            jax.ShapeDtypeStruct((B, 1, 1), jnp.float32),     # per-sample BCE term
        ),
        grid=(B, n_t),
        in_specs=[
            pl.BlockSpec(memory_space=pltpu.MemorySpace.SMEM),       # scal (whole, SMEM)
            pl.BlockSpec(memory_space=pltpu.MemorySpace.SMEM),       # targets (whole, SMEM)
            pl.BlockSpec((1, tile, KP), lambda b, t: (b, t, 0)),     # patches (pipelined)
            pl.BlockSpec((KP, C1), lambda b, t: (0, 0)),             # w_stem (resident)
            pl.BlockSpec((C1, CF), lambda b, t: (0, 0)),             # w_head (resident)
            pl.BlockSpec((1, CF), lambda b, t: (0, 0)),              # w_fc  (resident)
        ],
        out_specs=(
            pl.BlockSpec((1, 1, 1), lambda b, t: (b, 0, 0)),         # yhat (per-sample block)
            pl.BlockSpec((1, 1, 1), lambda b, t: (b, 0, 0)),         # loss (per-sample block)
        ),
        scratch_shapes=[pltpu.VMEM((1, CF), jnp.float32)],           # pooled-sum accumulator
        compiler_params=pltpu.CompilerParams(
            # per-sample outputs => batch axis can shard across TensorCores (v7x)
            dimension_semantics=("parallel", "arbitrary"),
            vmem_limit_bytes=vmem_limit,
        ),
    )(scal, tgt, patches_bf, wstem_bf, whead_bf, wfc)

    yhat = yhat3.reshape(B, 1)
    loss = jnp.mean(loss3)          # BCEWithLogitsLoss mean reduction
    return yhat, loss


def init_params(key, cin=3, c_stem=32, c_feat=1280):
    k0, k1, k2, k3 = jax.random.split(key, 4)
    return {
        # stem conv weight (kh, kw, cin, cout) flattened to (kh*kw*cin, cout)
        "w_stem": (jax.random.normal(k0, (3, 3, cin, c_stem), jnp.float32) * 0.1
                   ).reshape(9 * cin, c_stem),
        "w_head": jax.random.normal(k1, (c_stem, c_feat), jnp.float32) * 0.05,
        "w_fc":   jax.random.normal(k2, (c_feat, 1), jnp.float32) * 0.03,
        "b_fc":   jax.random.normal(k3, (1, 1), jnp.float32) * 0.01,
    }


if __name__ == "__main__":
    key = jax.random.PRNGKey(0)
    kp, kx, kt = jax.random.split(key, 3)

    B, Cin, H, W = 2, 3, 16, 16             # small synthetic RGB images
    params = init_params(kp, cin=Cin)
    images = jax.random.normal(kx, (B, Cin, H, W), jnp.float32)      # NCHW like PyTorch
    targets = (jax.random.uniform(kt, (B,)) > 0.5).astype(jnp.float32)
    pos_weight = 9.0                         # wp = torch.tensor(9 / 1)

    # tile_p=16 => grid (B, 4): exercises tile accumulation + pl.when finalize/loss gating
    yhat, loss = efnet_forward(images, targets, params, pos_weight, tile_p=16)
    jax.block_until_ready((yhat, loss))
    assert yhat.shape == (B, 1) and loss.shape == ()
    print("KERNEL_OK")
</pallas_src>

<mosaic_0001>
module attributes {stable_mosaic.version = 11 : i64} {
  func.func @efnet_kernel(%arg0: i32, %arg1: i32, %arg2: memref<3xf32, #tpu.memory_space<smem>>, %arg3: memref<2xf32, #tpu.memory_space<smem>>, %arg4: memref<1x16x32xbf16, #tpu.memory_space<vmem>>, %arg5: memref<32x32xbf16, #tpu.memory_space<vmem>>, %arg6: memref<32x1280xbf16, #tpu.memory_space<vmem>>, %arg7: memref<1x1280xf32, #tpu.memory_space<vmem>>, %arg8: memref<1x1x1xf32, #tpu.memory_space<vmem>>, %arg9: memref<1x1x1xf32, #tpu.memory_space<vmem>>, %arg10: memref<1x1280xf32, #tpu.memory_space<vmem>>) attributes {dimension_semantics = [#tpu.dimension_semantics<parallel>, #tpu.dimension_semantics<arbitrary>], iteration_bounds = array<i64: 2, 4>, scalar_prefetch = 0 : i64, scratch_operands = 1 : i64, tpu.core_type = #tpu.core_type<tc>, window_params = [{transform_indices = @transform_0, window_bounds = array<i64: 3>}, {transform_indices = @transform_1, window_bounds = array<i64: 2>}, {transform_indices = @transform_2, window_bounds = array<i64: 1, 16, 32>}, {pipeline_mode = #tpu.pipeline_mode<synchronous>, transform_indices = @transform_3, window_bounds = array<i64: 32, 32>}, {pipeline_mode = #tpu.pipeline_mode<synchronous>, transform_indices = @transform_4, window_bounds = array<i64: 32, 1280>}, {pipeline_mode = #tpu.pipeline_mode<synchronous>, transform_indices = @transform_5, window_bounds = array<i64: 1, 1280>}, {transform_indices = @transform_6, window_bounds = array<i64: 1, 1, 1>}, {transform_indices = @transform_7, window_bounds = array<i64: 1, 1, 1>}]} {
    %c0_i32 = arith.constant 0 : i32
    %0 = arith.cmpi eq, %arg1, %c0_i32 : i32
    %1 = arith.extui %0 : i1 to i32
    %c0_i32_0 = arith.constant 0 : i32
    %2 = arith.cmpi ne, %1, %c0_i32_0 : i32
    scf.if %2 {
      %cst_60 = arith.constant 0.000000e+00 : f32
      %94 = vector.broadcast %cst_60 : f32 to vector<1x1280xf32>
      %c0_61 = arith.constant 0 : index
      %c0_62 = arith.constant 0 : index
      %95 = vector.load %arg10[%c0_61, %c0_62] : memref<1x1280xf32, #tpu.memory_space<vmem>>, vector<1x1280xf32>
      tpu.vector_store %arg10[%c0_61, %c0_62], %94 {strides = array<i32>} : memref<1x1280xf32, #tpu.memory_space<vmem>>, vector<1x1280xf32>,
    } else {
    }
    %c0 = arith.constant 0 : index
    %c0_1 = arith.constant 0 : index
    %c0_2 = arith.constant 0 : index
    %3 = vector.load %arg4[%c0, %c0_1, %c0_2] : memref<1x16x32xbf16, #tpu.memory_space<vmem>>, vector<1x16x32xbf16>
    %4 = vector.shape_cast %3 : vector<1x16x32xbf16> to vector<16x32xbf16>
    %c0_3 = arith.constant 0 : index
    %c0_4 = arith.constant 0 : index
    %5 = vector.load %arg5[%c0_3, %c0_4] : memref<32x32xbf16, #tpu.memory_space<vmem>>, vector<32x32xbf16>
    %cst = arith.constant dense<0.000000e+00> : vector<16x32xf32>
    %6 = tpu.matmul %4, %5, %cst {dimension_numbers = #tpu.dot_dimension_numbers<[1], [0], [0], [1], [0, 0, 1, 1], [], []>} : vector<16x32xbf16>, vector<32x32xbf16>, vector<16x32xf32> -> vector<16x32xf32>
    %cst_5 = arith.constant 5.000000e-01 : f32
    %7 = vector.broadcast %cst_5 : f32 to vector<16x32xf32>
    %8 = arith.mulf %7, %6 : vector<16x32xf32>
    %9 = math.tanh %8 : vector<16x32xf32>
    %cst_6 = arith.constant 1.000000e+00 : f32
    %10 = vector.broadcast %cst_6 : f32 to vector<16x32xf32>
    %11 = arith.addf %10, %9 : vector<16x32xf32>
    %cst_7 = arith.constant 5.000000e-01 : f32
    %12 = vector.broadcast %cst_7 : f32 to vector<16x32xf32>
    %13 = arith.mulf %12, %11 : vector<16x32xf32>
    %14 = arith.mulf %6, %13 : vector<16x32xf32>
    %15 = arith.truncf %14 : vector<16x32xf32> to vector<16x32xbf16>
    %c0_8 = arith.constant 0 : index
    %c0_9 = arith.constant 0 : index
    %16 = vector.load %arg6[%c0_8, %c0_9] : memref<32x1280xbf16, #tpu.memory_space<vmem>>, vector<32x256xbf16>
    %cst_10 = arith.constant dense<0.000000e+00> : vector<16x256xf32>
    %17 = tpu.matmul %15, %16, %cst_10 {dimension_numbers = #tpu.dot_dimension_numbers<[1], [0], [0], [1], [0, 0, 1, 1], [], []>} : vector<16x32xbf16>, vector<32x256xbf16>, vector<16x256xf32> -> vector<16x256xf32>
    %c0_11 = arith.constant 0 : index
    %c0_12 = arith.constant 0 : index
    %18 = vector.load %arg10[%c0_11, %c0_12] : memref<1x1280xf32, #tpu.memory_space<vmem>>, vector<1x256xf32>
    %cst_13 = arith.constant 5.000000e-01 : f32
    %19 = vector.broadcast %cst_13 : f32 to vector<16x256xf32>
    %20 = arith.mulf %19, %17 : vector<16x256xf32>
    %21 = math.tanh %20 : vector<16x256xf32>
    %cst_14 = arith.constant 1.000000e+00 : f32
    %22 = vector.broadcast %cst_14 : f32 to vector<16x256xf32>
    %23 = arith.addf %22, %21 : vector<16x256xf32>
    %cst_15 = arith.constant 5.000000e-01 : f32
    %24 = vector.broadcast %cst_15 : f32 to vector<16x256xf32>
    %25 = arith.mulf %24, %23 : vector<16x256xf32>
    %26 = arith.mulf %17, %25 : vector<16x256xf32>
    %cst_16 = arith.constant dense<0.000000e+00> : vector<256xf32>
    %27 = vector.multi_reduction <add>, %26, %cst_16 [0] : vector<16x256xf32> to vector<256xf32>
    %28 = vector.shape_cast %27 : vector<256xf32> to vector<1x256xf32>
    %29 = arith.addf %18, %28 : vector<1x256xf32>
    %c0_17 = arith.constant 0 : index
    %c0_18 = arith.constant 0 : index
    %30 = vector.load %arg10[%c0_17, %c0_18] : memref<1x1280xf32, #tpu.memory_space<vmem>>, vector<1x256xf32>
    tpu.vector_store %arg10[%c0_17, %c0_18], %29 {strides = array<i32>} : memref<1x1280xf32, #tpu.memory_space<vmem>>, vector<1x256xf32>,
    %c0_19 = arith.constant 0 : index
    %c256 = arith.constant 256 : index
    %31 = vector.load %arg6[%c0_19, %c256] : memref<32x1280xbf16, #tpu.memory_space<vmem>>, vector<32x256xbf16>
    %cst_20 = arith.constant dense<0.000000e+00> : vector<16x256xf32>
    %32 = tpu.matmul %15, %31, %cst_20 {dimension_numbers = #tpu.dot_dimension_numbers<[1], [0], [0], [1], [0, 0, 1, 1], [], []>} : vector<16x32xbf16>, vector<32x256xbf16>, vector<16x256xf32> -> vector<16x256xf32>
    %c0_21 = arith.constant 0 : index
    %c256_22 = arith.constant 256 : index
    %33 = vector.load %arg10[%c0_21, %c256_22] : memref<1x1280xf32, #tpu.memory_space<vmem>>, vector<1x256xf32>
    %cst_23 = arith.constant 5.000000e-01 : f32
    %34 = vector.broadcast %cst_23 : f32 to vector<16x256xf32>
    %35 = arith.mulf %34, %32 : vector<16x256xf32>
    %36 = math.tanh %35 : vector<16x256xf32>
    %cst_24 = arith.constant 1.000000e+00 : f32
    %37 = vector.broadcast %cst_24 : f32 to vector<16x256xf32>
    %38 = arith.addf %37, %36 : vector<16x256xf32>
    %cst_25 = arith.constant 5.000000e-01 : f32
    %39 = vector.broadcast %cst_25 : f32 to vector<16x256xf32>
    %40 = arith.mulf %39, %38 : vector<16x256xf32>
    %41 = arith.mulf %32, %40 : vector<16x256xf32>
    %cst_26 = arith.constant dense<0.000000e+00> : vector<256xf32>
    %42 = vector.multi_reduction <add>, %41, %cst_26 [0] : vector<16x256xf32> to vector<256xf32>
    %43 = vector.shape_cast %42 : vector<256xf32> to vector<1x256xf32>
    %44 = arith.addf %33, %43 : vector<1x256xf32>
    %c0_27 = arith.constant 0 : index
    %c256_28 = arith.constant 256 : index
    %45 = vector.load %arg10[%c0_27, %c256_28] : memref<1x1280xf32, #tpu.memory_space<vmem>>, vector<1x256xf32>
    tpu.vector_store %arg10[%c0_27, %c256_28], %44 {strides = array<i32>} : memref<1x1280xf32, #tpu.memory_space<vmem>>, vector<1x256xf32>,
    %c0_29 = arith.constant 0 : index
    %c512 = arith.constant 512 : index
    %46 = vector.load %arg6[%c0_29, %c512] : memref<32x1280xbf16, #tpu.memory_space<vmem>>, vector<32x256xbf16>
    %cst_30 = arith.constant dense<0.000000e+00> : vector<16x256xf32>
    %47 = tpu.matmul %15, %46, %cst_30 {dimension_numbers = #tpu.dot_dimension_numbers<[1], [0], [0], [1], [0, 0, 1, 1], [], []>} : vector<16x32xbf16>, vector<32x256xbf16>, vector<16x256xf32> -> vector<16x256xf32>
    %c0_31 = arith.constant 0 : index
    %c512_32 = arith.constant 512 : index
    %48 = vector.load %arg10[%c0_31, %c512_32] : memref<1x1280xf32, #tpu.memory_space<vmem>>, vector<1x256xf32>
    %cst_33 = arith.constant 5.000000e-01 : f32
    %49 = vector.broadcast %cst_33 : f32 to vector<16x256xf32>
    %50 = arith.mulf %49, %47 : vector<16x256xf32>
    %51 = math.tanh %50 : vector<16x256xf32>
    %cst_34 = arith.constant 1.000000e+00 : f32
    %52 = vector.broadcast %cst_34 : f32 to vector<16x256xf32>
    %53 = arith.addf %52, %51 : vector<16x256xf32>
    %cst_35 = arith.constant 5.000000e-01 : f32
    %54 = vector.broadcast %cst_35 : f32 to vector<16x256xf32>
    %55 = arith.mulf %54, %53 : vector<16x256xf32>
    %56 = arith.mulf %47, %55 : vector<16x256xf32>
    %cst_36 = arith.constant dense<0.000000e+00> : vector<256xf32>
    %57 = vector.multi_reduction <add>, %56, %cst_36 [0] : vector<16x256xf32> to vector<256xf32>
    %58 = vector.shape_cast %57 : vector<256xf32> to vector<1x256xf32>
    %59 = arith.addf %48, %58 : vector<1x256xf32>
    %c0_37 = arith.constant 0 : index
    %c512_38 = arith.constant 512 : index
    %60 = vector.load %arg10[%c0_37, %c512_38] : memref<1x1280xf32, #tpu.memory_space<vmem>>, vector<1x256xf32>
    tpu.vector_store %arg10[%c0_37, %c512_38], %59 {strides = array<i32>} : memref<1x1280xf32, #tpu.memory_space<vmem>>, vector<1x256xf32>,
    %c0_39 = arith.constant 0 : index
    %c768 = arith.constant 768 : index
    %61 = vector.load %arg6[%c0_39, %c768] : memref<32x1280xbf16, #tpu.memory_space<vmem>>, vector<32x256xbf16>
    %cst_40 = arith.constant dense<0.000000e+00> : vector<16x256xf32>
    %62 = tpu.matmul %15, %61, %cst_40 {dimension_numbers = #tpu.dot_dimension_numbers<[1], [0], [0], [1], [0, 0, 1, 1], [], []>} : vector<16x32xbf16>, vector<32x256xbf16>, vector<16x256xf32> -> vector<16x256xf32>
    %c0_41 = arith.constant 0 : index
    %c768_42 = arith.constant 768 : index
    %63 = vector.load %arg10[%c0_41, %c768_42] : memref<1x1280xf32, #tpu.memory_space<vmem>>, vector<1x256xf32>
    %cst_43 = arith.constant 5.000000e-01 : f32
    %64 = vector.broadcast %cst_43 : f32 to vector<16x256xf32>
    %65 = arith.mulf %64, %62 : vector<16x256xf32>
    %66 = math.tanh %65 : vector<16x256xf32>
    %cst_44 = arith.constant 1.000000e+00 : f32
    %67 = vector.broadcast %cst_44 : f32 to vector<16x256xf32>
    %68 = arith.addf %67, %66 : vector<16x256xf32>
    %cst_45 = arith.constant 5.000000e-01 : f32
    %69 = vector.broadcast %cst_45 : f32 to vector<16x256xf32>
    %70 = arith.mulf %69, %68 : vector<16x256xf32>
    %71 = arith.mulf %62, %70 : vector<16x256xf32>
    %cst_46 = arith.constant dense<0.000000e+00> : vector<256xf32>
    %72 = vector.multi_reduction <add>, %71, %cst_46 [0] : vector<16x256xf32> to vector<256xf32>
    %73 = vector.shape_cast %72 : vector<256xf32> to vector<1x256xf32>
    %74 = arith.addf %63, %73 : vector<1x256xf32>
    %c0_47 = arith.constant 0 : index
    %c768_48 = arith.constant 768 : index
    %75 = vector.load %arg10[%c0_47, %c768_48] : memref<1x1280xf32, #tpu.memory_space<vmem>>, vector<1x256xf32>
    tpu.vector_store %arg10[%c0_47, %c768_48], %74 {strides = array<i32>} : memref<1x1280xf32, #tpu.memory_space<vmem>>, vector<1x256xf32>,
    %c0_49 = arith.constant 0 : index
    %c1024 = arith.constant 1024 : index
    %76 = vector.load %arg6[%c0_49, %c1024] : memref<32x1280xbf16, #tpu.memory_space<vmem>>, vector<32x256xbf16>
    %cst_50 = arith.constant dense<0.000000e+00> : vector<16x256xf32>
    %77 = tpu.matmul %15, %76, %cst_50 {dimension_numbers = #tpu.dot_dimension_numbers<[1], [0], [0], [1], [0, 0, 1, 1], [], []>} : vector<16x32xbf16>, vector<32x256xbf16>, vector<16x256xf32> -> vector<16x256xf32>
    %c0_51 = arith.constant 0 : index
    %c1024_52 = arith.constant 1024 : index
    %78 = vector.load %arg10[%c0_51, %c1024_52] : memref<1x1280xf32, #tpu.memory_space<vmem>>, vector<1x256xf32>
    %cst_53 = arith.constant 5.000000e-01 : f32
    %79 = vector.broadcast %cst_53 : f32 to vector<16x256xf32>
    %80 = arith.mulf %79, %77 : vector<16x256xf32>
    %81 = math.tanh %80 : vector<16x256xf32>
    %cst_54 = arith.constant 1.000000e+00 : f32
    %82 = vector.broadcast %cst_54 : f32 to vector<16x256xf32>
    %83 = arith.addf %82, %81 : vector<16x256xf32>
    %cst_55 = arith.constant 5.000000e-01 : f32
    %84 = vector.broadcast %cst_55 : f32 to vector<16x256xf32>
    %85 = arith.mulf %84, %83 : vector<16x256xf32>
    %86 = arith.mulf %77, %85 : vector<16x256xf32>
    %cst_56 = arith.constant dense<0.000000e+00> : vector<256xf32>
    %87 = vector.multi_reduction <add>, %86, %cst_56 [0] : vector<16x256xf32> to vector<256xf32>
    %88 = vector.shape_cast %87 : vector<256xf32> to vector<1x256xf32>
    %89 = arith.addf %78, %88 : vector<1x256xf32>
    %c0_57 = arith.constant 0 : index
    %c1024_58 = arith.constant 1024 : index
    %90 = vector.load %arg10[%c0_57, %c1024_58] : memref<1x1280xf32, #tpu.memory_space<vmem>>, vector<1x256xf32>
    tpu.vector_store %arg10[%c0_57, %c1024_58], %89 {strides = array<i32>} : memref<1x1280xf32, #tpu.memory_space<vmem>>, vector<1x256xf32>,
    %c3_i32 = arith.constant 3 : i32
    %91 = arith.cmpi eq, %arg1, %c3_i32 : i32
    %92 = arith.extui %91 : i1 to i32
    %c0_i32_59 = arith.constant 0 : i32
    %93 = arith.cmpi ne, %92, %c0_i32_59 : i32
    scf.if %93 {
      %c0_60 = arith.constant 0 : index
      %c0_61 = arith.constant 0 : index
      %94 = vector.load %arg10[%c0_60, %c0_61] : memref<1x1280xf32, #tpu.memory_space<vmem>>, vector<1x1280xf32>
      %c2 = arith.constant 2 : index
      %95 = memref.load %arg2[%c2] : memref<3xf32, #tpu.memory_space<smem>>
      %96 = vector.broadcast %95 : f32 to vector<1x1280xf32>
      %97 = arith.mulf %94, %96 : vector<1x1280xf32>
      %c0_62 = arith.constant 0 : index
      %c0_63 = arith.constant 0 : index
      %98 = vector.load %arg7[%c0_62, %c0_63] : memref<1x1280xf32, #tpu.memory_space<vmem>>, vector<1x1280xf32>
      %99 = arith.mulf %97, %98 : vector<1x1280xf32>
      %cst_64 = arith.constant dense<0.000000e+00> : vector<1xf32>
      %100 = vector.multi_reduction <add>, %99, %cst_64 [1] : vector<1x1280xf32> to vector<1xf32>
      %101 = vector.shape_cast %100 : vector<1xf32> to vector<1x1xf32>
      %c1 = arith.constant 1 : index
      %102 = memref.load %arg2[%c1] : memref<3xf32, #tpu.memory_space<smem>>
      %103 = vector.broadcast %102 : f32 to vector<1x1xf32>
      %104 = arith.addf %101, %103 : vector<1x1xf32>
      %105 = vector.shape_cast %104 : vector<1x1xf32> to vector<1x1x1xf32>
      %c0_65 = arith.constant 0 : index
      %c0_66 = arith.constant 0 : index
      %c0_67 = arith.constant 0 : index
      %106 = vector.load %arg8[%c0_65, %c0_66, %c0_67] : memref<1x1x1xf32, #tpu.memory_space<vmem>>, vector<1x1x1xf32>
      tpu.vector_store %arg8[%c0_65, %c0_66, %c0_67], %105 {strides = array<i32>} : memref<1x1x1xf32, #tpu.memory_space<vmem>>, vector<1x1x1xf32>,
      %c0_68 = arith.constant 0 : index
      %107 = memref.load %arg2[%c0_68] : memref<3xf32, #tpu.memory_space<smem>>
      %108 = arith.index_cast %arg0 : i32 to index
      %109 = memref.load %arg3[%108] : memref<2xf32, #tpu.memory_space<smem>>
      %110 = arith.mulf %107, %109 : f32
      %cst_69 = arith.constant 0.000000e+00 : f32
      %111 = vector.broadcast %cst_69 : f32 to vector<1x1xf32>
      %112 = arith.subf %111, %104 : vector<1x1xf32>
      %cst_70 = arith.constant 0.000000e+00 : f32
      %113 = vector.broadcast %cst_70 : f32 to vector<1x1xf32>
      %114 = arith.maximumf %112, %113 : vector<1x1xf32>
      %115 = math.absf %112 : vector<1x1xf32>
      %cst_71 = arith.constant 0.000000e+00 : f32
      %116 = vector.broadcast %cst_71 : f32 to vector<1x1xf32>
      %117 = arith.subf %116, %115 : vector<1x1xf32>
      %118 = math.exp %117 : vector<1x1xf32>
      %119 = math.log1p %118 : vector<1x1xf32>
      %120 = arith.addf %114, %119 : vector<1x1xf32>
      %121 = vector.broadcast %110 : f32 to vector<1x1xf32>
      %122 = arith.mulf %121, %120 : vector<1x1xf32>
      %cst_72 = arith.constant 1.000000e+00 : f32
      %123 = arith.subf %cst_72, %109 : f32
      %cst_73 = arith.constant 0.000000e+00 : f32
      %124 = vector.broadcast %cst_73 : f32 to vector<1x1xf32>
      %125 = arith.maximumf %104, %124 : vector<1x1xf32>
      %126 = math.absf %104 : vector<1x1xf32>
      %cst_74 = arith.constant 0.000000e+00 : f32
      %127 = vector.broadcast %cst_74 : f32 to vector<1x1xf32>
      %128 = arith.subf %127, %126 : vector<1x1xf32>
      %129 = math.exp %128 : vector<1x1xf32>
      %130 = math.log1p %129 : vector<1x1xf32>
      %131 = arith.addf %125, %130 : vector<1x1xf32>
      %132 = vector.broadcast %123 : f32 to vector<1x1xf32>
      %133 = arith.mulf %132, %131 : vector<1x1xf32>
      %134 = arith.addf %122, %133 : vector<1x1xf32>
      %135 = vector.shape_cast %134 : vector<1x1xf32> to vector<1x1x1xf32>
      %c0_75 = arith.constant 0 : index
      %c0_76 = arith.constant 0 : index
      %c0_77 = arith.constant 0 : index
      %136 = vector.load %arg9[%c0_75, %c0_76, %c0_77] : memref<1x1x1xf32, #tpu.memory_space<vmem>>, vector<1x1x1xf32>
      tpu.vector_store %arg9[%c0_75, %c0_76, %c0_77], %135 {strides = array<i32>} : memref<1x1x1xf32, #tpu.memory_space<vmem>>, vector<1x1x1xf32>,
    } else {
    }
    return
  }
  func.func @transform_0(%arg0: i32, %arg1: i32) -> i32 {
    %c0_i32 = arith.constant 0 : i32
    %c0_i32_0 = arith.constant 0 : i32
    return %c0_i32 : i32
  }
  func.func @transform_1(%arg0: i32, %arg1: i32) -> i32 {
    %c0_i32 = arith.constant 0 : i32
    %c0_i32_0 = arith.constant 0 : i32
    return %c0_i32 : i32
  }
  func.func @transform_2(%arg0: i32, %arg1: i32) -> (i32, i32, i32) {
    %c0_i32 = arith.constant 0 : i32
    %c0_i32_0 = arith.constant 0 : i32
    return %arg0, %arg1, %c0_i32 : i32, i32, i32
  }
  func.func @transform_3(%arg0: i32, %arg1: i32) -> (i32, i32) {
    %c0_i32 = arith.constant 0 : i32
    %c0_i32_0 = arith.constant 0 : i32
    %c0_i32_1 = arith.constant 0 : i32
    return %c0_i32, %c0_i32_0 : i32, i32
  }
  func.func @transform_4(%arg0: i32, %arg1: i32) -> (i32, i32) {
    %c0_i32 = arith.constant 0 : i32
    %c0_i32_0 = arith.constant 0 : i32
    %c0_i32_1 = arith.constant 0 : i32
    return %c0_i32, %c0_i32_0 : i32, i32
  }
  func.func @transform_5(%arg0: i32, %arg1: i32) -> (i32, i32) {
    %c0_i32 = arith.constant 0 : i32
    %c0_i32_0 = arith.constant 0 : i32
    %c0_i32_1 = arith.constant 0 : i32
    return %c0_i32, %c0_i32_0 : i32, i32
  }
  func.func @transform_6(%arg0: i32, %arg1: i32) -> (i32, i32, i32) {
    %c0_i32 = arith.constant 0 : i32
    %c0_i32_0 = arith.constant 0 : i32
    %c0_i32_1 = arith.constant 0 : i32
    return %arg0, %c0_i32, %c0_i32_0 : i32, i32, i32
  }
  func.func @transform_7(%arg0: i32, %arg1: i32) -> (i32, i32, i32) {
    %c0_i32 = arith.constant 0 : i32
    %c0_i32_0 = arith.constant 0 : i32
    %c0_i32_1 = arith.constant 0 : i32
    return %arg0, %c0_i32, %c0_i32_0 : i32, i32, i32
  }
}

</mosaic_0001>

<llo_original>
// kernel: tpu_custom_call.1
$region0: #{tpu_custom_call.1}
  #allocation0 [shape = 'u32[]', space=smem, size = 0x4, offset = 0x4, fixed_abs, tag = 'smem constant byte address 0x4 - core index']
  #allocation1 [shape = 'u32[144,128]{1,0:T(1,128)}', space=vmem, size = 0x12000, scoped, tag = 'internal scratch']
  #allocation2 [shape = 'f32[1,1280]{1,0:T(1,128)}', space=vmem, size = 0x1400, scoped, tag = 'scratch operand']
  %s0 = inlined_call_operand.vmem [shape: f32[3], index: 0, kind: input, shape index: {}]
  %s1 = inlined_call_operand.vmem [shape: f32[2], index: 1, kind: input, shape index: {}]
  %s2 = inlined_call_operand.vmem [shape: bf16[2,64,32], index: 2, kind: input, shape index: {}]
  %s3 = inlined_call_operand.vmem [shape: bf16[32,32], index: 3, kind: input, shape index: {}]
  %s4 = inlined_call_operand.hbm [shape: bf16[32,1280], index: 4, kind: input, shape index: {}]
  %s5 = inlined_call_operand.vmem [shape: f32[1,1280], index: 5, kind: input, shape index: {}]
  %s6 = inlined_call_operand.vmem [shape: f32[2,1,1], index: 6, kind: output, shape index: {0}]
  %s7 = inlined_call_operand.vmem [shape: f32[2,1,1], index: 7, kind: output, shape index: {1}]
  %8 = xla_tuple %s6, %s7
  %s9 = sld [smem:[#allocation0]]
  $region85: #{tpu_custom_call.1} parent=0
    _
  %s11 = ssub.s32 1, %s9
  %s12 = scalar_select 0, %s11, %s9
  $region1: #{tpu_custom_call.1} parent=0
    #allocation3 [shape = 'u8[512]{0}', space=smem, size = 0x200, scoped, tag = 'input window, operand 0, single buffered']
    #allocation4 [shape = 's32[2]{0}', space=sflag, size = 0x8, scoped, tag = 'scoped memory for tpu_custom_call.1']
    #allocation5 [shape = 's32[2]{0}', space=sflag, size = 0x8, scoped, tag = 'scoped memory for tpu_custom_call.1']
    #allocation6 [shape = 'u8[512]{0}', space=smem, size = 0x200, scoped, tag = 'input window, operand 1, single buffered']
    #allocation7 [shape = 's32[1]{0}', space=sflag, size = 0x4, scoped, tag = 'scoped memory for tpu_custom_call.1']
    #allocation8 [shape = 'u8[81920]{0}', space=vmem, size = 0x14000, scoped, tag = 'input window, operand 4, single buffered']
    %13 = vsyncpa [#allocation5], 0
    %14 = vsyncpa [#allocation7], 0
    %15 = vsyncpa [#allocation4], 0
    loop: start=0, step=1, limit=10
    $region2: #{tpu_custom_call.1} parent=1 // loop_pre_header
      _
    $region3: #{tpu_custom_call.1} parent=1 // loop_header
      %s17 = sphi 0, %s21
      %p18 = scmp.ge.s32.totalorder %s17, 10
      %s24 = sphi 0, %s36
      %s25 = sphi 0, %s32
      %s26 = sphi 0, %s24
      %s27 = sphi 0, %s25
      %s28 = sphi 0, %s26
      %s29 = sphi 0, %s27
      %s37 = sphi 0, %s37
      %s39 = sphi 0, %s37
      %s40 = sphi 0, %s39
      %s54 = sphi 0, %s40
      %s58 = sphi 0, %s58
      %s60 = sphi 0, %s58
      %s61 = sphi 0, %s60
      %s75 = sphi 0, %s61
      %s83 = sphi 0, %s85
      %s86 = sphi 0, %s83
      %s87 = sphi 0, %s86
      %s103 = sphi 0, %s87
      %s107 = sphi 0, %s107
      %s109 = sphi 0, %s107
      %s110 = sphi 0, %s109
      %s124 = sphi 0, %s110
      %s128 = sphi 0, %s128
      %s130 = sphi 0, %s128
      %s131 = sphi 0, %s130
      %s145 = sphi 0, %s131
      %s149 = sphi 0, %s149
      %s151 = sphi 0, %s149
      %s152 = sphi 0, %s151
      %s166 = sphi 0, %s152
      %s172 = sphi 0, %s174
      %s175 = sphi 0, %s172
      %s176 = sphi 0, %s175
      %s192 = sphi 0, %s176
      %s198 = sphi 0, %s200
      %s201 = sphi 0, %s198
      %s202 = sphi 0, %s201
      %s218 = sphi 0, %s202
    $region4: #{tpu_custom_call.1} parent=1 // loop_header_branch
      %20 = sbr.rel (%p18) target = $region8
    $region5: #{tpu_custom_call.1} parent=1 // loop_body
      %s22 = ssub.s32 %s17, 1
      %s23 = ssub.s32 %s17, 2
      %s30 = sadd.s32 1, %s25
      %p31 = scmp.ge.s32.totalorder %s30, 4
      %s32 = scalar_select %p31, 0, %s30
      %s33 = sadd.s32 1, %s24
      %s34 = scalar_select %p31, %s33, %s24
      %p35 = scmp.ge.s32.totalorder %s34, 2
      %s36 = scalar_select %p35, 0, %s34
      %s38 = sadd.s32 %s37, 1
      %p41 = scmp.eq.s32.totalorder %s17, 7
      %p42 = scmp.ne.s32.totalorder %s37, %s39
      %p43 = scmp.eq.s32.totalorder %s17, 0
      %p44 = por %p42, %p43
      %p45 = scmp.ne.s32.totalorder %s37, %s39
      %p46 = scmp.eq.s32.totalorder %s22, 7
      %p47 = por %p45, %p46
      %p48 = scmp.ne.s32.totalorder %s39, %s40
      %p49 = scmp.eq.s32.totalorder %s22, 0
      %p50 = por %p48, %p49
      %p51 = scmp.ne.s32.totalorder %s39, %s40
      %p52 = scmp.eq.s32.totalorder %s23, 7
      %p53 = por %p51, %p52
      %p55 = scmp.ne.s32.totalorder %s40, %s54
      %p56 = scmp.eq.s32.totalorder %s23, 0
      %p57 = por %p55, %p56
      %s59 = sadd.s32 %s58, 1
      %p62 = scmp.eq.s32.totalorder %s17, 7
      %p63 = scmp.ne.s32.totalorder %s58, %s60
      %p64 = scmp.eq.s32.totalorder %s17, 0
      %p65 = por %p63, %p64
      %p66 = scmp.ne.s32.totalorder %s58, %s60
      %p67 = scmp.eq.s32.totalorder %s22, 7
      %p68 = por %p66, %p67
      %p69 = scmp.ne.s32.totalorder %s60, %s61
      %p70 = scmp.eq.s32.totalorder %s22, 0
      %p71 = por %p69, %p70
      %p72 = scmp.ne.s32.totalorder %s60, %s61
      %p73 = scmp.eq.s32.totalorder %s23, 7
      %p74 = por %p72, %p73
      %p76 = scmp.ne.s32.totalorder %s61, %s75
      %p77 = scmp.eq.s32.totalorder %s23, 0
      %p78 = por %p76, %p77
      %s79 = ssub.s32 %s24, %s36
      %s80 = ssub.s32 %s25, %s32
      %s81 = sor.u32 %s79, %s80
      %p82 = scmp.eq.s32.totalorder %s81, 0
      %s84 = sadd.s32 %s83, 1
      %s85 = scalar_select %p82, %s83, %s84
      %p88 = pneg %p82
      %p89 = scmp.eq.s32.totalorder %s17, 7
      %p90 = por %p88, %p89
      %p91 = scmp.ne.s32.totalorder %s83, %s86
      %p92 = scmp.eq.s32.totalorder %s17, 0
      %p93 = por %p91, %p92
      %p94 = scmp.ne.s32.totalorder %s83, %s86
      %p95 = scmp.eq.s32.totalorder %s22, 7
      %p96 = por %p94, %p95
      %p97 = scmp.ne.s32.totalorder %s86, %s87
      %p98 = scmp.eq.s32.totalorder %s22, 0
      %p99 = por %p97, %p98
      %p100 = scmp.ne.s32.totalorder %s86, %s87
      %p101 = scmp.eq.s32.totalorder %s23, 7
      %p102 = por %p100, %p101
      %p104 = scmp.ne.s32.totalorder %s87, %s103
      %p105 = scmp.eq.s32.totalorder %s23, 0
      %p106 = por %p104, %p105
      %s108 = sadd.s32 %s107, 1
      %p111 = scmp.eq.s32.totalorder %s17, 7
      %p112 = scmp.ne.s32.totalorder %s107, %s109
      %p113 = scmp.eq.s32.totalorder %s17, 0
      %p114 = por %p112, %p113
      %p115 = scmp.ne.s32.totalorder %s107, %s109
      %p116 = scmp.eq.s32.totalorder %s22, 7
      %p117 = por %p115, %p116
      %p118 = scmp.ne.s32.totalorder %s109, %s110
      %p119 = scmp.eq.s32.totalorder %s22, 0
      %p120 = por %p118, %p119
      %p121 = scmp.ne.s32.totalorder %s109, %s110
      %p122 = scmp.eq.s32.totalorder %s23, 7
      %p123 = por %p121, %p122
      %p125 = scmp.ne.s32.totalorder %s110, %s124
      %p126 = scmp.eq.s32.totalorder %s23, 0
      %p127 = por %p125, %p126
      %s129 = sadd.s32 %s128, 1
      %p132 = scmp.eq.s32.totalorder %s17, 7
      %p133 = scmp.ne.s32.totalorder %s128, %s130
      %p134 = scmp.eq.s32.totalorder %s17, 0
      %p135 = por %p133, %p134
      %p136 = scmp.ne.s32.totalorder %s128, %s130
      %p137 = scmp.eq.s32.totalorder %s22, 7
      %p138 = por %p136, %p137
      %p139 = scmp.ne.s32.totalorder %s130, %s131
      %p140 = scmp.eq.s32.totalorder %s22, 0
      %p141 = por %p139, %p140
      %p142 = scmp.ne.s32.totalorder %s130, %s131
      %p143 = scmp.eq.s32.totalorder %s23, 7
      %p144 = por %p142, %p143
      %p146 = scmp.ne.s32.totalorder %s131, %s145
      %p147 = scmp.eq.s32.totalorder %s23, 0
      %p148 = por %p146, %p147
      %s150 = sadd.s32 %s149, 1
      %p153 = scmp.eq.s32.totalorder %s17, 7
      %p154 = scmp.ne.s32.totalorder %s149, %s151
      %p155 = scmp.eq.s32.totalorder %s17, 0
      %p156 = por %p154, %p155
      %p157 = scmp.ne.s32.totalorder %s149, %s151
      %p158 = scmp.eq.s32.totalorder %s22, 7
      %p159 = por %p157, %p158
      %p160 = scmp.ne.s32.totalorder %s151, %s152
      %p161 = scmp.eq.s32.totalorder %s22, 0
      %p162 = por %p160, %p161
      %p163 = scmp.ne.s32.totalorder %s151, %s152
      %p164 = scmp.eq.s32.totalorder %s23, 7
      %p165 = por %p163, %p164
      %p167 = scmp.ne.s32.totalorder %s152, %s166
      %p168 = scmp.eq.s32.totalorder %s23, 0
      %p169 = por %p167, %p168
      %s170 = ssub.s32 %s24, %s36
      %p171 = scmp.eq.s32.totalorder %s170, 0
      %s173 = sadd.s32 %s172, 1
      %s174 = scalar_select %p171, %s172, %s173
      %p177 = pneg %p171
      %p178 = scmp.eq.s32.totalorder %s17, 7
      %p179 = por %p177, %p178
      %p180 = scmp.ne.s32.totalorder %s172, %s175
      %p181 = scmp.eq.s32.totalorder %s17, 0
      %p182 = por %p180, %p181
      %p183 = scmp.ne.s32.totalorder %s172, %s175
      %p184 = scmp.eq.s32.totalorder %s22, 7
      %p185 = por %p183, %p184
      %p186 = scmp.ne.s32.totalorder %s175, %s176
      %p187 = scmp.eq.s32.totalorder %s22, 0
      %p188 = por %p186, %p187
      %p189 = scmp.ne.s32.totalorder %s175, %s176
      %p190 = scmp.eq.s32.totalorder %s23, 7
      %p191 = por %p189, %p190
      %p193 = scmp.ne.s32.totalorder %s176, %s192
      %p194 = scmp.eq.s32.totalorder %s23, 0
      %p195 = por %p193, %p194
      %s196 = ssub.s32 %s24, %s36
      %p197 = scmp.eq.s32.totalorder %s196, 0
      %s199 = sadd.s32 %s198, 1
      %s200 = scalar_select %p197, %s198, %s199
      %p203 = pneg %p197
      %p204 = scmp.eq.s32.totalorder %s17, 7
      %p205 = por %p203, %p204
      %p206 = scmp.ne.s32.totalorder %s198, %s201
      %p207 = scmp.eq.s32.totalorder %s17, 0
      %p208 = por %p206, %p207
      %p209 = scmp.ne.s32.totalorder %s198, %s201
      %p210 = scmp.eq.s32.totalorder %s22, 7
      %p211 = por %p209, %p210
      %p212 = scmp.ne.s32.totalorder %s201, %s202
      %p213 = scmp.eq.s32.totalorder %s22, 0
      %p214 = por %p212, %p213
      %p215 = scmp.ne.s32.totalorder %s201, %s202
      %p216 = scmp.eq.s32.totalorder %s23, 7
      %p217 = por %p215, %p216
      %p219 = scmp.ne.s32.totalorder %s202, %s218
      %p220 = scmp.eq.s32.totalorder %s23, 0
      %p221 = por %p219, %p220
      %p222 = scmp.le.s32.totalorder 1, %s17
      %p223 = scmp.lt.s32.totalorder %s17, 9
      %p224 = pnand %p222, %p223
      %p225 = pneg %p224
      // Predicated region
      $region9: #{tpu_custom_call.1} parent=5 // pred_check
        _
      $region10: #{tpu_custom_call.1} parent=5 // pred_check_branch
        %227 = sbr.rel (%p224) target = $region12
      $region11: #{tpu_custom_call.1} parent=5 // pred_region
        %s228 = ssub.s32 %s17, 1
        // Predicated region
        $region13: #{tpu_custom_call.1} parent=11 // pred_check
          %p229 = pneg %p50
        $region14: #{tpu_custom_call.1} parent=11 // pred_check_branch
          %231 = sbr.rel (%p229) target = $region16
        $region15: #{tpu_custom_call.1} parent=11 // pred_region
          %s233 = ssub.s32 16, 16
          %234 = vsyncadd [#allocation5], %s233
          %s236 = sshll.u32 %s0, 4
          %s237 = int_to_ptr.vmem [resolvable:$true] %s236
          %239 = dma.vmem_to_smem %s237, 16, [#allocation3], [#allocation5]
        $region16: #{tpu_custom_call.1} parent=11 // pred_fallthru
          _
        // Predicated region
        $region17: #{tpu_custom_call.1} parent=11 // pred_check
          %p240 = pneg %p71
        $region18: #{tpu_custom_call.1} parent=11 // pred_check_branch
          %242 = sbr.rel (%p240) target = $region20
        $region19: #{tpu_custom_call.1} parent=11 // pred_region
          %s244 = ssub.s32 16, 16
          %245 = vsyncadd [#allocation7], %s244
          %s247 = sshll.u32 %s1, 4
          %s248 = int_to_ptr.vmem [resolvable:$true] %s247
          %250 = dma.vmem_to_smem %s248, 16, [#allocation6], [#allocation7]
        $region20: #{tpu_custom_call.1} parent=11 // pred_fallthru
          _
        // Predicated region
        $region21: #{tpu_custom_call.1} parent=11 // pred_check
          %p251 = pneg %p120
        $region22: #{tpu_custom_call.1} parent=11 // pred_check_branch
          %253 = sbr.rel (%p251) target = $region24
        $region23: #{tpu_custom_call.1} parent=11 // pred_region
          _
        $region24: #{tpu_custom_call.1} parent=11 // pred_fallthru
          _
        // Predicated region
        $region25: #{tpu_custom_call.1} parent=11 // pred_check
          %p254 = pneg %p141
        $region26: #{tpu_custom_call.1} parent=11 // pred_check_branch
          %256 = sbr.rel (%p254) target = $region28
        $region27: #{tpu_custom_call.1} parent=11 // pred_region
          %s258 = ssub.s32 2560, 2560
          %259 = vsyncadd [#allocation4], %s258
          %s260 = sshll.u32 [#allocation8], 4
          %s261 = int_to_ptr.vmem [resolvable:$true] %s260
          %266 = dma.hbm_to_vmem [thread:$0]  %s4, 2560, %s261, [#allocation4], 640, 640, 40
        $region28: #{tpu_custom_call.1} parent=11 // pred_fallthru
          _
        // Predicated region
        $region29: #{tpu_custom_call.1} parent=11 // pred_check
          %p267 = pneg %p162
        $region30: #{tpu_custom_call.1} parent=11 // pred_check_branch
          %269 = sbr.rel (%p267) target = $region32
        $region31: #{tpu_custom_call.1} parent=11 // pred_region
          _
        $region32: #{tpu_custom_call.1} parent=11 // pred_fallthru
          _
      $region12: #{tpu_custom_call.1} parent=5 // pred_fallthru
        _
      %p270 = scmp.lt.s32.totalorder %s17, 8
      // Predicated region
      $region33: #{tpu_custom_call.1} parent=5 // pred_check
        %p271 = pneg %p270
      $region34: #{tpu_custom_call.1} parent=5 // pred_check_branch
        %273 = sbr.rel (%p271) target = $region36
      $region35: #{tpu_custom_call.1} parent=5 // pred_region
        // Predicated region
        $region37: #{tpu_custom_call.1} parent=35 // pred_check
          %p274 = pneg %p93
        $region38: #{tpu_custom_call.1} parent=35 // pred_check_branch
          %276 = sbr.rel (%p274) target = $region40
        $region39: #{tpu_custom_call.1} parent=35 // pred_region
          %s277 = smul.u32 2, %s25
          %p278 = scmp.lt.s32.totalorder %s24, 1
          %s279 = scalar_select %p278, %s24, 1
          %p280 = scmp.lt.s32.totalorder %s277, 7
          %s281 = scalar_select %p280, %s277, 7
          %s282 = smul.addr %s279, 8
          %s283 = sadd.s32 %s281, %s282
          %s284 = smul.addr %s283, 4
          %s285 = scalar_lea.vmem %s2, %s284
          %s286 = smul.u32 2, %s25
        $region40: #{tpu_custom_call.1} parent=35 // pred_fallthru
          _
      $region36: #{tpu_custom_call.1} parent=5 // pred_fallthru
        _
      %p287 = scmp.le.s32.totalorder 1, %s17
      %p288 = scmp.lt.s32.totalorder %s17, 9
      %p289 = pnand %p287, %p288
      %p290 = pneg %p289
      // Predicated region
      $region41: #{tpu_custom_call.1} parent=5 // pred_check
        _
      $region42: #{tpu_custom_call.1} parent=5 // pred_check_branch
        %292 = sbr.rel (%p289) target = $region44
      $region43: #{tpu_custom_call.1} parent=5 // pred_region
        %s293 = ssub.s32 %s17, 1
        // Predicated region
        $region45: #{tpu_custom_call.1} parent=43 // pred_check
          %p294 = pneg %p50
        $region46: #{tpu_custom_call.1} parent=43 // pred_check_branch
          %296 = sbr.rel (%p294) target = $region48
        $region47: #{tpu_custom_call.1} parent=43 // pred_region
          %297 = dma.done [#allocation5], 16
        $region48: #{tpu_custom_call.1} parent=43 // pred_fallthru
          _
        // Predicated region
        $region49: #{tpu_custom_call.1} parent=43 // pred_check
          %p298 = pneg %p71
        $region50: #{tpu_custom_call.1} parent=43 // pred_check_branch
          %300 = sbr.rel (%p298) target = $region52
        $region51: #{tpu_custom_call.1} parent=43 // pred_region
          %301 = dma.done [#allocation7], 16
        $region52: #{tpu_custom_call.1} parent=43 // pred_fallthru
          _
        // Predicated region
        $region53: #{tpu_custom_call.1} parent=43 // pred_check
          %p302 = pneg %p141
        $region54: #{tpu_custom_call.1} parent=43 // pred_check_branch
          %304 = sbr.rel (%p302) target = $region56
        $region55: #{tpu_custom_call.1} parent=43 // pred_region
          %305 = dma.done [#allocation4], 2560
        $region56: #{tpu_custom_call.1} parent=43 // pred_fallthru
          _
        %306 = sfence
        %p307 = pneg %p50
        %p308 = pneg %p47
        %p309 = pneg %p71
        %p310 = pneg %p68
        %s311 = smul.u32 2, %s27
        %p312 = scmp.lt.s32.totalorder %s26, 1
        %s313 = scalar_select %p312, %s26, 1
        %p314 = scmp.lt.s32.totalorder %s311, 7
        %s315 = scalar_select %p314, %s311, 7
        %s316 = smul.addr %s313, 8
        %s317 = sadd.s32 %s315, %s316
        %s318 = smul.addr %s317, 4
        %s319 = scalar_lea.vmem %s2, %s318
        %p320 = pneg %p99
        %p321 = pneg %p96
        %p322 = pneg %p120
        %p323 = pneg %p117
        %p324 = pneg %p141
        %p325 = pneg %p138
        %p326 = pneg %p162
        %p327 = pneg %p159
        %p328 = pneg %p188
        %p329 = pneg %p185
        %p330 = scmp.lt.s32.totalorder %s26, 1
        %s331 = scalar_select %p330, %s26, 1
        %s332 = scalar_lea.vmem %s6, %s331
        %p333 = pneg %p214
        %p334 = pneg %p211
        %p335 = scmp.lt.s32.totalorder %s26, 1
        %s336 = scalar_select %p335, %s26, 1
        %s337 = scalar_lea.vmem %s7, %s336
        %s338 = smul.u32 2, %s27
        %p339 = scmp.lt.s32.totalorder %s26, 1
        %s340 = scalar_select %p339, %s26, 1
        %p341 = scmp.lt.s32.totalorder %s338, 7
        %s342 = scalar_select %p341, %s338, 7
        %s343 = smul.addr %s340, 8
        %s344 = sadd.s32 %s342, %s343
        %s345 = smul.addr %s344, 4
        %s346 = scalar_lea.vmem %s2, %s345
        %s347 = smul.u32 2, %s27
        %p348 = scmp.lt.s32.totalorder %s26, 1
        %s349 = scalar_select %p348, %s26, 1
        %s350 = scalar_lea.vmem %s6, %s349
        %p351 = scmp.lt.s32.totalorder %s26, 1
        %s352 = scalar_select %p351, %s26, 1
        %s353 = scalar_lea.vmem %s7, %s352
        %p355 = scmp.eq.s32.totalorder %s27, 0
        // Predicated region
        $region57: #{tpu_custom_call.1} parent=43 // pred_check
          %p356 = pneg %p355
        $region58: #{tpu_custom_call.1} parent=43 // pred_check_branch
          %358 = sbr.rel (%p356) target = $region60
        $region59: #{tpu_custom_call.1} parent=43 // pred_region
          %359 = vst [vmem:[#allocation2] sm:$0xff] 0.0
          %v360 = vlaneseq
          %vm361 = vcmp.ge.s32.totalorder %v360, 0
          %vm362 = vcmp.lt.s32.totalorder %v360, 256
          %vm363 = vmand %vm361, %vm362
          %364 = vst.msk [vmem:[#allocation2 + $0x8] sm:$0x3] %vm363, 0.0
        $region60: #{tpu_custom_call.1} parent=43 // pred_fallthru
          _
        %v365 = vld [vmem:[%s346] sm:$0xf]
        %v366 = vld [vmem:[%s346 + $0x4] sm:$0xf]
        %v367 = vld [vmem:[%s3] sm:$0xf]
        %v368 = vld [vmem:[%s3 + $0x4] sm:$0xf]
        %v369 = vld [vmem:[%s3 + $0x8] sm:$0xf]
        %v370 = vld [vmem:[%s3 + $0xc] sm:$0xf]
        %v373 = vunpack.c.l.b16 %v365
        %v374 = vunpack.c.l.b16 %v366
        %v375 = vpack.c.b16 %v374, %v373
        %v380 = vunpack.c.l.b16 %v367
        %v381 = vunpack.c.l.b16 %v368
        %v382 = vunpack.c.l.b16 %v369
        %v383 = vunpack.c.l.b16 %v370
        %v384 = vpack.c.b16 %v381, %v380
        %v385 = vpack.c.b16 %v383, %v382
        %vm388 = vcmask 261120
        %v390 = vsel %vm388, %v375, 0
        %392 = vmatprep.subr.bf16.mxu0 0
        %393 = vmatpush1.bf16.msra.mxu0 %v384
        %394 = vmatprep.subr.bf16.mxu0 0
        %395 = vmatpush1.bf16.msra.mxu0 %v385
        %396 = vmatprep.subr.bf16.mxu0 0
        %397 = vmatpush1.bf16.msra.mxu0 0
        %398 = vmatprep.subr.bf16.mxu0 0
        %399 = vmatpush1.bf16.msra.mxu0 0
        %400 = vmatprep.subr.bf16.mxu0 0
        %401 = vmatpush1.bf16.msra.mxu0 0
        %402 = vmatprep.subr.bf16.mxu0 0
        %403 = vmatpush1.bf16.msra.mxu0 0
        %404 = vmatprep.subr.bf16.mxu0 0
        %405 = vmatpush1.bf16.msra.mxu0 0
        %406 = vmatprep.subr.bf16.mxu0 0
        %407 = vmatpush1.bf16.msra.mxu0 0
        %408 = vmatprep.subr.bf16.mxu0 0
        %409 = vmatpush1.bf16.msra.mxu0 0
        %410 = vmatprep.subr.bf16.mxu0 0
        %411 = vmatpush1.bf16.msra.mxu0 0
        %412 = vmatprep.subr.bf16.mxu0 0
        %413 = vmatpush1.bf16.msra.mxu0 0
        %414 = vmatprep.subr.bf16.mxu0 0
        %415 = vmatpush1.bf16.msra.mxu0 0
        %416 = vmatprep.subr.bf16.mxu0 0
        %417 = vmatpush1.bf16.msra.mxu0 0
        %418 = vmatprep.subr.bf16.mxu0 0
        %419 = vmatpush1.bf16.msra.mxu0 0
        %420 = vmatprep.subr.bf16.mxu0 0
        %421 = vmatpush1.bf16.msra.mxu0 0
        %422 = vmatprep.subr.bf16.mxu0 0
        %423 = vmatpush1.bf16.msra.mxu0 0
        %424 = vmatprep.mubr.bf16.mxu0 0
        %425 = vmatmul.mubr.bf16.gmra.mrb[0].mxu0 %v390
        %v426 = vpop.f32.mrb[0].mxu0
        %v427 = vadd.f32 0.0, %v426
        %v428 = vpop.f32.mrb[0].mxu0
        %v429 = vpop.f32.mrb[0].mxu0
        %v430 = vadd.f32 0.0, %v429
        %v431 = vpop.f32.mrb[0].mxu0
        %432 = vdwg.mxu0
        %v433 = vmul.f32 %v427, 0.5
        %v434 = vmul.f32 %v430, 0.5
        %v435 = vtanh.pop %v433
        %v436 = vtanh.pop %v434
        %v437 = vadd.f32 %v435, 1.0
        %v438 = vadd.f32 %v436, 1.0
        %v439 = vmul.f32 %v437, 0.5
        %v440 = vmul.f32 %v438, 0.5
        %v441 = vmul.f32 %v427, %v439
        %v442 = vmul.f32 %v430, %v440
        %v443 = vpack.c.bf16 %v442, %v441
        %v444 = vld [vmem:[#allocation8] sm:$0xff]
        %v445 = vld [vmem:[#allocation8 + $0x28] sm:$0xff]
        %v446 = vld [vmem:[#allocation8 + $0x50] sm:$0xff]
        %v447 = vld [vmem:[#allocation8 + $0x78] sm:$0xff]
        %v452 = vunpack.c.l.b16 %v444
        %v453 = vunpack.c.h.b16 %v444
        %v454 = vunpack.c.l.b16 %v445
        %v455 = vunpack.c.h.b16 %v445
        %v456 = vunpack.c.l.b16 %v446
        %v457 = vunpack.c.h.b16 %v446
        %v458 = vunpack.c.l.b16 %v447
        %v459 = vunpack.c.h.b16 %v447
        %v460 = vpack.c.b16 %v454, %v452
        %v461 = vpack.c.b16 %v455, %v453
        %v462 = vpack.c.b16 %v458, %v456
        %v463 = vpack.c.b16 %v459, %v457
        %v469 = vsel %vm388, %v443, 0
        %471 = vmatprep.subr.bf16.mxu0 %v461
        %472 = vmatpush1.bf16.msra.mxu0 %v460
        %473 = vmatprep.subr.bf16.mxu0 %v463
        %474 = vmatpush1.bf16.msra.mxu0 %v462
        %475 = vmatprep.subr.bf16.mxu0 0
        %476 = vmatpush1.bf16.msra.mxu0 0
        %477 = vmatprep.subr.bf16.mxu0 0
        %478 = vmatpush1.bf16.msra.mxu0 0
        %479 = vmatprep.subr.bf16.mxu0 0
        %480 = vmatpush1.bf16.msra.mxu0 0
        %481 = vmatprep.subr.bf16.mxu0 0
        %482 = vmatpush1.bf16.msra.mxu0 0
        %483 = vmatprep.subr.bf16.mxu0 0
        %484 = vmatpush1.bf16.msra.mxu0 0
        %485 = vmatprep.subr.bf16.mxu0 0
        %486 = vmatpush1.bf16.msra.mxu0 0
        %487 = vmatprep.subr.bf16.mxu0 0
        %488 = vmatpush1.bf16.msra.mxu0 0
        %489 = vmatprep.subr.bf16.mxu0 0
        %490 = vmatpush1.bf16.msra.mxu0 0
        %491 = vmatprep.subr.bf16.mxu0 0
        %492 = vmatpush1.bf16.msra.mxu0 0
        %493 = vmatprep.subr.bf16.mxu0 0
        %494 = vmatpush1.bf16.msra.mxu0 0
        %495 = vmatprep.subr.bf16.mxu0 0
        %496 = vmatpush1.bf16.msra.mxu0 0
        %497 = vmatprep.subr.bf16.mxu0 0
        %498 = vmatpush1.bf16.msra.mxu0 0
        %499 = vmatprep.subr.bf16.mxu0 0
        %500 = vmatpush1.bf16.msra.mxu0 0
        %501 = vmatprep.subr.bf16.mxu0 0
        %502 = vmatpush1.bf16.msra.mxu0 0
        %503 = vmatprep.mubr.bf16.mxu0 0
        %504 = vmatmul.mubr.bf16.gmra.mrb[0].mxu0 %v469
        %v505 = vpop.f32.mrb[0].mxu0
        %v506 = vadd.f32 0.0, %v505
        %v507 = vpop.f32.mrb[0].mxu0
        %v508 = vadd.f32 0.0, %v507
        %v509 = vpop.f32.mrb[0].mxu0
        %v510 = vadd.f32 0.0, %v509
        %v511 = vpop.f32.mrb[0].mxu0
        %v512 = vadd.f32 0.0, %v511
        %513 = vdwg.mxu0
        %v514 = vld [vmem:[#allocation2] sm:$0x3]
        %v515 = vmul.f32 %v506, 0.5
        %v516 = vmul.f32 %v508, 0.5
        %v517 = vmul.f32 %v510, 0.5
        %v518 = vmul.f32 %v512, 0.5
        %v519 = vtanh.pop %v515
        %v520 = vtanh.pop %v516
        %v521 = vtanh.pop %v517
        %v522 = vtanh.pop %v518
        %v523 = vadd.f32 %v519, 1.0
        %v524 = vadd.f32 %v520, 1.0
        %v525 = vadd.f32 %v521, 1.0
        %v526 = vadd.f32 %v522, 1.0
        %v527 = vmul.f32 %v523, 0.5
        %v528 = vmul.f32 %v524, 0.5
        %v529 = vmul.f32 %v525, 0.5
        %v530 = vmul.f32 %v526, 0.5
        %v531 = vmul.f32 %v506, %v527
        %v532 = vmul.f32 %v508, %v528
        %v533 = vmul.f32 %v510, %v529
        %v534 = vmul.f32 %v512, %v530
        %v535 = vadd.f32 %v531, %v533
        %v536 = vrot.slane %v535, 4
        %v537 = vadd.f32 %v535, %v536
        %v538 = vrot.slane %v537, 2
        %v539 = vadd.f32 %v537, %v538
        %v540 = vrot.slane %v539, 1
        %v541 = vadd.f32 %v539, %v540
        %v542 = vadd.f32 %v532, %v534
        %v543 = vrot.slane %v542, 4
        %v544 = vadd.f32 %v542, %v543
        %v545 = vrot.slane %v544, 2
        %v546 = vadd.f32 %v544, %v545
        %v547 = vrot.slane %v546, 1
        %v548 = vadd.f32 %v546, %v547
        %v551 = vcombine.low %v541, %v548
        %v553 = vunpack.c.l.s4 1966171168
        %v554 = vunpack.c.0.s8 %v553
        %v555 = vlaneseq
        %v556 = vshrl.u32 %v555, 7
        %v557 = vsub.s32 %v554, %v556
        %v558 = vrot.slane %v551, %v557
        %v560 = vunpack.c.l.s4 1966171168
        %v561 = vunpack.c.0.s8 %v560
        %v562 = vlaneseq
        %v563 = vshrl.u32 %v562, 7
        %v564 = vsub.s32 %v561, %v563
        %v565 = vrot.slane %v558, %v564
        %v567 = vadd.f32 %v514, %v565
        %v568 = vlaneseq
        %vm569 = vcmp.ge.s32.totalorder %v568, 0
        %vm570 = vcmp.lt.s32.totalorder %v568, 256
        %vm571 = vmand %vm569, %vm570
        %572 = vst.msk [vmem:[#allocation2] sm:$0x3] %vm571, %v567
        %v573 = vld [vmem:[#allocation8 + $0x8] sm:$0xff]
        %v574 = vld [vmem:[#allocation8 + $0x30] sm:$0xff]
        %v575 = vld [vmem:[#allocation8 + $0x58] sm:$0xff]
        %v576 = vld [vmem:[#allocation8 + $0x80] sm:$0xff]
        %v581 = vunpack.c.l.b16 %v573
        %v582 = vunpack.c.h.b16 %v573
        %v583 = vunpack.c.l.b16 %v574
        %v584 = vunpack.c.h.b16 %v574
        %v585 = vunpack.c.l.b16 %v575
        %v586 = vunpack.c.h.b16 %v575
        %v587 = vunpack.c.l.b16 %v576
        %v588 = vunpack.c.h.b16 %v576
        %v589 = vpack.c.b16 %v583, %v581
        %v590 = vpack.c.b16 %v584, %v582
        %v591 = vpack.c.b16 %v587, %v585
        %v592 = vpack.c.b16 %v588, %v586
        %597 = vmatprep.subr.bf16.mxu0 %v590
        %598 = vmatpush1.bf16.msra.mxu0 %v589
        %599 = vmatprep.subr.bf16.mxu0 %v592
        %600 = vmatpush1.bf16.msra.mxu0 %v591
        %601 = vmatprep.subr.bf16.mxu0 0
        %602 = vmatpush1.bf16.msra.mxu0 0
        %603 = vmatprep.subr.bf16.mxu0 0
        %604 = vmatpush1.bf16.msra.mxu0 0
        %605 = vmatprep.subr.bf16.mxu0 0
        %606 = vmatpush1.bf16.msra.mxu0 0
        %607 = vmatprep.subr.bf16.mxu0 0
        %608 = vmatpush1.bf16.msra.mxu0 0
        %609 = vmatprep.subr.bf16.mxu0 0
        %610 = vmatpush1.bf16.msra.mxu0 0
        %611 = vmatprep.subr.bf16.mxu0 0
        %612 = vmatpush1.bf16.msra.mxu0 0
        %613 = vmatprep.subr.bf16.mxu0 0
        %614 = vmatpush1.bf16.msra.mxu0 0
        %615 = vmatprep.subr.bf16.mxu0 0
        %616 = vmatpush1.bf16.msra.mxu0 0
        %617 = vmatprep.subr.bf16.mxu0 0
        %618 = vmatpush1.bf16.msra.mxu0 0
        %619 = vmatprep.subr.bf16.mxu0 0
        %620 = vmatpush1.bf16.msra.mxu0 0
        %621 = vmatprep.subr.bf16.mxu0 0
        %622 = vmatpush1.bf16.msra.mxu0 0
        %623 = vmatprep.subr.bf16.mxu0 0
        %624 = vmatpush1.bf16.msra.mxu0 0
        %625 = vmatprep.subr.bf16.mxu0 0
        %626 = vmatpush1.bf16.msra.mxu0 0
        %627 = vmatprep.subr.bf16.mxu0 0
        %628 = vmatpush1.bf16.msra.mxu0 0
        %629 = vmatprep.mubr.bf16.mxu0 0
        %630 = vmatmul.mubr.bf16.gmra.mrb[0].mxu0 %v469
        %v631 = vpop.f32.mrb[0].mxu0
        %v632 = vadd.f32 0.0, %v631
        %v633 = vpop.f32.mrb[0].mxu0
        %v634 = vadd.f32 0.0, %v633
        %v635 = vpop.f32.mrb[0].mxu0
        %v636 = vadd.f32 0.0, %v635
        %v637 = vpop.f32.mrb[0].mxu0
        %v638 = vadd.f32 0.0, %v637
        %639 = vdwg.mxu0
        %v640 = vld [vmem:[#allocation2 + $0x2] sm:$0x3]
        %v641 = vmul.f32 %v632, 0.5
        %v642 = vmul.f32 %v634, 0.5
        %v643 = vmul.f32 %v636, 0.5
        %v644 = vmul.f32 %v638, 0.5
        %v645 = vtanh.pop %v641
        %v646 = vtanh.pop %v642
        %v647 = vtanh.pop %v643
        %v648 = vtanh.pop %v644
        %v649 = vadd.f32 %v645, 1.0
        %v650 = vadd.f32 %v646, 1.0
        %v651 = vadd.f32 %v647, 1.0
        %v652 = vadd.f32 %v648, 1.0
        %v653 = vmul.f32 %v649, 0.5
        %v654 = vmul.f32 %v650, 0.5
        %v655 = vmul.f32 %v651, 0.5
        %v656 = vmul.f32 %v652, 0.5
        %v657 = vmul.f32 %v632, %v653
        %v658 = vmul.f32 %v634, %v654
        %v659 = vmul.f32 %v636, %v655
        %v660 = vmul.f32 %v638, %v656
        %v661 = vadd.f32 %v657, %v659
        %v662 = vrot.slane %v661, 4
        %v663 = vadd.f32 %v661, %v662
        %v664 = vrot.slane %v663, 2
        %v665 = vadd.f32 %v663, %v664
        %v666 = vrot.slane %v665, 1
        %v667 = vadd.f32 %v665, %v666
        %v668 = vadd.f32 %v658, %v660
        %v669 = vrot.slane %v668, 4
        %v670 = vadd.f32 %v668, %v669
        %v671 = vrot.slane %v670, 2
        %v672 = vadd.f32 %v670, %v671
        %v673 = vrot.slane %v672, 1
        %v674 = vadd.f32 %v672, %v673
        %v677 = vcombine.low %v667, %v674
        %v679 = vunpack.c.l.s4 1966171168
        %v680 = vunpack.c.0.s8 %v679
        %v681 = vlaneseq
        %v682 = vshrl.u32 %v681, 7
        %v683 = vsub.s32 %v680, %v682
        %v684 = vrot.slane %v677, %v683
        %v686 = vunpack.c.l.s4 1966171168
        %v687 = vunpack.c.0.s8 %v686
        %v688 = vlaneseq
        %v689 = vshrl.u32 %v688, 7
        %v690 = vsub.s32 %v687, %v689
        %v691 = vrot.slane %v684, %v690
        %v693 = vadd.f32 %v640, %v691
        %694 = vst.msk [vmem:[#allocation2 + $0x2] sm:$0x3] %vm571, %v693
        %v695 = vld [vmem:[#allocation8 + $0x10] sm:$0xff]
        %v696 = vld [vmem:[#allocation8 + $0x38] sm:$0xff]
        %v697 = vld [vmem:[#allocation8 + $0x60] sm:$0xff]
        %v698 = vld [vmem:[#allocation8 + $0x88] sm:$0xff]
        %v703 = vunpack.c.l.b16 %v695
        %v704 = vunpack.c.h.b16 %v695
        %v705 = vunpack.c.l.b16 %v696
        %v706 = vunpack.c.h.b16 %v696
        %v707 = vunpack.c.l.b16 %v697
        %v708 = vunpack.c.h.b16 %v697
        %v709 = vunpack.c.l.b16 %v698
        %v710 = vunpack.c.h.b16 %v698
        %v711 = vpack.c.b16 %v705, %v703
        %v712 = vpack.c.b16 %v706, %v704
        %v713 = vpack.c.b16 %v709, %v707
        %v714 = vpack.c.b16 %v710, %v708
        %719 = vmatprep.subr.bf16.mxu0 %v712
        %720 = vmatpush1.bf16.msra.mxu0 %v711
        %721 = vmatprep.subr.bf16.mxu0 %v714
        %722 = vmatpush1.bf16.msra.mxu0 %v713
        %723 = vmatprep.subr.bf16.mxu0 0
        %724 = vmatpush1.bf16.msra.mxu0 0
        %725 = vmatprep.subr.bf16.mxu0 0
        %726 = vmatpush1.bf16.msra.mxu0 0
        %727 = vmatprep.subr.bf16.mxu0 0
        %728 = vmatpush1.bf16.msra.mxu0 0
        %729 = vmatprep.subr.bf16.mxu0 0
        %730 = vmatpush1.bf16.msra.mxu0 0
        %731 = vmatprep.subr.bf16.mxu0 0
        %732 = vmatpush1.bf16.msra.mxu0 0
        %733 = vmatprep.subr.bf16.mxu0 0
        %734 = vmatpush1.bf16.msra.mxu0 0
        %735 = vmatprep.subr.bf16.mxu0 0
        %736 = vmatpush1.bf16.msra.mxu0 0
        %737 = vmatprep.subr.bf16.mxu0 0
        %738 = vmatpush1.bf16.msra.mxu0 0
        %739 = vmatprep.subr.bf16.mxu0 0
        %740 = vmatpush1.bf16.msra.mxu0 0
        %741 = vmatprep.subr.bf16.mxu0 0
        %742 = vmatpush1.bf16.msra.mxu0 0
        %743 = vmatprep.subr.bf16.mxu0 0
        %744 = vmatpush1.bf16.msra.mxu0 0
        %745 = vmatprep.subr.bf16.mxu0 0
        %746 = vmatpush1.bf16.msra.mxu0 0
        %747 = vmatprep.subr.bf16.mxu0 0
        %748 = vmatpush1.bf16.msra.mxu0 0
        %749 = vmatprep.subr.bf16.mxu0 0
        %750 = vmatpush1.bf16.msra.mxu0 0
        %751 = vmatprep.mubr.bf16.mxu0 0
        %752 = vmatmul.mubr.bf16.gmra.mrb[0].mxu0 %v469
        %v753 = vpop.f32.mrb[0].mxu0
        %v754 = vadd.f32 0.0, %v753
        %v755 = vpop.f32.mrb[0].mxu0
        %v756 = vadd.f32 0.0, %v755
        %v757 = vpop.f32.mrb[0].mxu0
        %v758 = vadd.f32 0.0, %v757
        %v759 = vpop.f32.mrb[0].mxu0
        %v760 = vadd.f32 0.0, %v759
        %761 = vdwg.mxu0
        %v762 = vld [vmem:[#allocation2 + $0x4] sm:$0x3]
        %v763 = vmul.f32 %v754, 0.5
        %v764 = vmul.f32 %v756, 0.5
        %v765 = vmul.f32 %v758, 0.5
        %v766 = vmul.f32 %v760, 0.5
        %v767 = vtanh.pop %v763
        %v768 = vtanh.pop %v764
        %v769 = vtanh.pop %v765
        %v770 = vtanh.pop %v766
        %v771 = vadd.f32 %v767, 1.0
        %v772 = vadd.f32 %v768, 1.0
        %v773 = vadd.f32 %v769, 1.0
        %v774 = vadd.f32 %v770, 1.0
        %v775 = vmul.f32 %v771, 0.5
        %v776 = vmul.f32 %v772, 0.5
        %v777 = vmul.f32 %v773, 0.5
        %v778 = vmul.f32 %v774, 0.5
        %v779 = vmul.f32 %v754, %v775
        %v780 = vmul.f32 %v756, %v776
        %v781 = vmul.f32 %v758, %v777
        %v782 = vmul.f32 %v760, %v778
        %v783 = vadd.f32 %v779, %v781
        %v784 = vrot.slane %v783, 4
        %v785 = vadd.f32 %v783, %v784
        %v786 = vrot.slane %v785, 2
        %v787 = vadd.f32 %v785, %v786
        %v788 = vrot.slane %v787, 1
        %v789 = vadd.f32 %v787, %v788
        %v790 = vadd.f32 %v780, %v782
        %v791 = vrot.slane %v790, 4
        %v792 = vadd.f32 %v790, %v791
        %v793 = vrot.slane %v792, 2
        %v794 = vadd.f32 %v792, %v793
        %v795 = vrot.slane %v794, 1
        %v796 = vadd.f32 %v794, %v795
        %v799 = vcombine.low %v789, %v796
        %v801 = vunpack.c.l.s4 1966171168
        %v802 = vunpack.c.0.s8 %v801
        %v803 = vlaneseq
        %v804 = vshrl.u32 %v803, 7
        %v805 = vsub.s32 %v802, %v804
        %v806 = vrot.slane %v799, %v805
        %v808 = vunpack.c.l.s4 1966171168
        %v809 = vunpack.c.0.s8 %v808
        %v810 = vlaneseq
        %v811 = vshrl.u32 %v810, 7
        %v812 = vsub.s32 %v809, %v811
        %v813 = vrot.slane %v806, %v812
        %v815 = vadd.f32 %v762, %v813
        %816 = vst.msk [vmem:[#allocation2 + $0x4] sm:$0x3] %vm571, %v815
        %v817 = vld [vmem:[#allocation8 + $0x18] sm:$0xff]
        %v818 = vld [vmem:[#allocation8 + $0x40] sm:$0xff]
        %v819 = vld [vmem:[#allocation8 + $0x68] sm:$0xff]
        %v820 = vld [vmem:[#allocation8 + $0x90] sm:$0xff]
        %v825 = vunpack.c.l.b16 %v817
        %v826 = vunpack.c.h.b16 %v817
        %v827 = vunpack.c.l.b16 %v818
        %v828 = vunpack.c.h.b16 %v818
        %v829 = vunpack.c.l.b16 %v819
        %v830 = vunpack.c.h.b16 %v819
        %v831 = vunpack.c.l.b16 %v820
        %v832 = vunpack.c.h.b16 %v820
        %v833 = vpack.c.b16 %v827, %v825
        %v834 = vpack.c.b16 %v828, %v826
        %v835 = vpack.c.b16 %v831, %v829
        %v836 = vpack.c.b16 %v832, %v830
        %841 = vmatprep.subr.bf16.mxu0 %v834
        %842 = vmatpush1.bf16.msra.mxu0 %v833
        %843 = vmatprep.subr.bf16.mxu0 %v836
        %844 = vmatpush1.bf16.msra.mxu0 %v835
        %845 = vmatprep.subr.bf16.mxu0 0
        %846 = vmatpush1.bf16.msra.mxu0 0
        %847 = vmatprep.subr.bf16.mxu0 0
        %848 = vmatpush1.bf16.msra.mxu0 0
        %849 = vmatprep.subr.bf16.mxu0 0
        %850 = vmatpush1.bf16.msra.mxu0 0
        %851 = vmatprep.subr.bf16.mxu0 0
        %852 = vmatpush1.bf16.msra.mxu0 0
        %853 = vmatprep.subr.bf16.mxu0 0
        %854 = vmatpush1.bf16.msra.mxu0 0
        %855 = vmatprep.subr.bf16.mxu0 0
        %856 = vmatpush1.bf16.msra.mxu0 0
        %857 = vmatprep.subr.bf16.mxu0 0
        %858 = vmatpush1.bf16.msra.mxu0 0
        %859 = vmatprep.subr.bf16.mxu0 0
        %860 = vmatpush1.bf16.msra.mxu0 0
        %861 = vmatprep.subr.bf16.mxu0 0
        %862 = vmatpush1.bf16.msra.mxu0 0
        %863 = vmatprep.subr.bf16.mxu0 0
        %864 = vmatpush1.bf16.msra.mxu0 0
        %865 = vmatprep.subr.bf16.mxu0 0
        %866 = vmatpush1.bf16.msra.mxu0 0
        %867 = vmatprep.subr.bf16.mxu0 0
        %868 = vmatpush1.bf16.msra.mxu0 0
        %869 = vmatprep.subr.bf16.mxu0 0
        %870 = vmatpush1.bf16.msra.mxu0 0
        %871 = vmatprep.subr.bf16.mxu0 0
        %872 = vmatpush1.bf16.msra.mxu0 0
        %873 = vmatprep.mubr.bf16.mxu0 0
        %874 = vmatmul.mubr.bf16.gmra.mrb[0].mxu0 %v469
        %v875 = vpop.f32.mrb[0].mxu0
        %v876 = vadd.f32 0.0, %v875
        %v877 = vpop.f32.mrb[0].mxu0
        %v878 = vadd.f32 0.0, %v877
        %v879 = vpop.f32.mrb[0].mxu0
        %v880 = vadd.f32 0.0, %v879
        %v881 = vpop.f32.mrb[0].mxu0
        %v882 = vadd.f32 0.0, %v881
        %883 = vdwg.mxu0
        %v884 = vld [vmem:[#allocation2 + $0x6] sm:$0x3]
        %v885 = vmul.f32 %v876, 0.5
        %v886 = vmul.f32 %v878, 0.5
        %v887 = vmul.f32 %v880, 0.5
        %v888 = vmul.f32 %v882, 0.5
        %v889 = vtanh.pop %v885
        %v890 = vtanh.pop %v886
        %v891 = vtanh.pop %v887
        %v892 = vtanh.pop %v888
        %v893 = vadd.f32 %v889, 1.0
        %v894 = vadd.f32 %v890, 1.0
        %v895 = vadd.f32 %v891, 1.0
        %v896 = vadd.f32 %v892, 1.0
        %v897 = vmul.f32 %v893, 0.5
        %v898 = vmul.f32 %v894, 0.5
        %v899 = vmul.f32 %v895, 0.5
        %v900 = vmul.f32 %v896, 0.5
        %v901 = vmul.f32 %v876, %v897
        %v902 = vmul.f32 %v878, %v898
        %v903 = vmul.f32 %v880, %v899
        %v904 = vmul.f32 %v882, %v900
        %v905 = vadd.f32 %v901, %v903
        %v906 = vrot.slane %v905, 4
        %v907 = vadd.f32 %v905, %v906
        %v908 = vrot.slane %v907, 2
        %v909 = vadd.f32 %v907, %v908
        %v910 = vrot.slane %v909, 1
        %v911 = vadd.f32 %v909, %v910
        %v912 = vadd.f32 %v902, %v904
        %v913 = vrot.slane %v912, 4
        %v914 = vadd.f32 %v912, %v913
        %v915 = vrot.slane %v914, 2
        %v916 = vadd.f32 %v914, %v915
        %v917 = vrot.slane %v916, 1
        %v918 = vadd.f32 %v916, %v917
        %v921 = vcombine.low %v911, %v918
        %v923 = vunpack.c.l.s4 1966171168
        %v924 = vunpack.c.0.s8 %v923
        %v925 = vlaneseq
        %v926 = vshrl.u32 %v925, 7
        %v927 = vsub.s32 %v924, %v926
        %v928 = vrot.slane %v921, %v927
        %v930 = vunpack.c.l.s4 1966171168
        %v931 = vunpack.c.0.s8 %v930
        %v932 = vlaneseq
        %v933 = vshrl.u32 %v932, 7
        %v934 = vsub.s32 %v931, %v933
        %v935 = vrot.slane %v928, %v934
        %v937 = vadd.f32 %v884, %v935
        %938 = vst.msk [vmem:[#allocation2 + $0x6] sm:$0x3] %vm571, %v937
        %v939 = vld [vmem:[#allocation8 + $0x20] sm:$0xff]
        %v940 = vld [vmem:[#allocation8 + $0x48] sm:$0xff]
        %v941 = vld [vmem:[#allocation8 + $0x70] sm:$0xff]
        %v942 = vld [vmem:[#allocation8 + $0x98] sm:$0xff]
        %v947 = vunpack.c.l.b16 %v939
        %v948 = vunpack.c.h.b16 %v939
        %v949 = vunpack.c.l.b16 %v940
        %v950 = vunpack.c.h.b16 %v940
        %v951 = vunpack.c.l.b16 %v941
        %v952 = vunpack.c.h.b16 %v941
        %v953 = vunpack.c.l.b16 %v942
        %v954 = vunpack.c.h.b16 %v942
        %v955 = vpack.c.b16 %v949, %v947
        %v956 = vpack.c.b16 %v950, %v948
        %v957 = vpack.c.b16 %v953, %v951
        %v958 = vpack.c.b16 %v954, %v952
        %963 = vmatprep.subr.bf16.mxu0 %v956
        %964 = vmatpush1.bf16.msra.mxu0 %v955
        %965 = vmatprep.subr.bf16.mxu0 %v958
        %966 = vmatpush1.bf16.msra.mxu0 %v957
        %967 = vmatprep.subr.bf16.mxu0 0
        %968 = vmatpush1.bf16.msra.mxu0 0
        %969 = vmatprep.subr.bf16.mxu0 0
        %970 = vmatpush1.bf16.msra.mxu0 0
        %971 = vmatprep.subr.bf16.mxu0 0
        %972 = vmatpush1.bf16.msra.mxu0 0
        %973 = vmatprep.subr.bf16.mxu0 0
        %974 = vmatpush1.bf16.msra.mxu0 0
        %975 = vmatprep.subr.bf16.mxu0 0
        %976 = vmatpush1.bf16.msra.mxu0 0
        %977 = vmatprep.subr.bf16.mxu0 0
        %978 = vmatpush1.bf16.msra.mxu0 0
        %979 = vmatprep.subr.bf16.mxu0 0
        %980 = vmatpush1.bf16.msra.mxu0 0
        %981 = vmatprep.subr.bf16.mxu0 0
        %982 = vmatpush1.bf16.msra.mxu0 0
        %983 = vmatprep.subr.bf16.mxu0 0
        %984 = vmatpush1.bf16.msra.mxu0 0
        %985 = vmatprep.subr.bf16.mxu0 0
        %986 = vmatpush1.bf16.msra.mxu0 0
        %987 = vmatprep.subr.bf16.mxu0 0
        %988 = vmatpush1.bf16.msra.mxu0 0
        %989 = vmatprep.subr.bf16.mxu0 0
        %990 = vmatpush1.bf16.msra.mxu0 0
        %991 = vmatprep.subr.bf16.mxu0 0
        %992 = vmatpush1.bf16.msra.mxu0 0
        %993 = vmatprep.subr.bf16.mxu0 0
        %994 = vmatpush1.bf16.msra.mxu0 0
        %995 = vmatprep.mubr.bf16.mxu0 0
        %996 = vmatmul.mubr.bf16.gmra.mrb[0].mxu0 %v469
        %v997 = vpop.f32.mrb[0].mxu0
        %v998 = vadd.f32 0.0, %v997
        %v999 = vpop.f32.mrb[0].mxu0
        %v1000 = vadd.f32 0.0, %v999
        %v1001 = vpop.f32.mrb[0].mxu0
        %v1002 = vadd.f32 0.0, %v1001
        %v1003 = vpop.f32.mrb[0].mxu0
        %v1004 = vadd.f32 0.0, %v1003
        %1005 = vdwg.mxu0
        %v1006 = vld [vmem:[#allocation2 + $0x8] sm:$0x3]
        %v1007 = vmul.f32 %v998, 0.5
        %v1008 = vmul.f32 %v1000, 0.5
        %v1009 = vmul.f32 %v1002, 0.5
        %v1010 = vmul.f32 %v1004, 0.5
        %v1011 = vtanh.pop %v1007
        %v1012 = vtanh.pop %v1008
        %v1013 = vtanh.pop %v1009
        %v1014 = vtanh.pop %v1010
        %v1015 = vadd.f32 %v1011, 1.0
        %v1016 = vadd.f32 %v1012, 1.0
        %v1017 = vadd.f32 %v1013, 1.0
        %v1018 = vadd.f32 %v1014, 1.0
        %v1019 = vmul.f32 %v1015, 0.5
        %v1020 = vmul.f32 %v1016, 0.5
        %v1021 = vmul.f32 %v1017, 0.5
        %v1022 = vmul.f32 %v1018, 0.5
        %v1023 = vmul.f32 %v998, %v1019
        %v1024 = vmul.f32 %v1000, %v1020
        %v1025 = vmul.f32 %v1002, %v1021
        %v1026 = vmul.f32 %v1004, %v1022
        %v1027 = vadd.f32 %v1023, %v1025
        %v1028 = vrot.slane %v1027, 4
        %v1029 = vadd.f32 %v1027, %v1028
        %v1030 = vrot.slane %v1029, 2
        %v1031 = vadd.f32 %v1029, %v1030
        %v1032 = vrot.slane %v1031, 1
        %v1033 = vadd.f32 %v1031, %v1032
        %v1034 = vadd.f32 %v1024, %v1026
        %v1035 = vrot.slane %v1034, 4
        %v1036 = vadd.f32 %v1034, %v1035
        %v1037 = vrot.slane %v1036, 2
        %v1038 = vadd.f32 %v1036, %v1037
        %v1039 = vrot.slane %v1038, 1
        %v1040 = vadd.f32 %v1038, %v1039
        %v1043 = vcombine.low %v1033, %v1040
        %v1045 = vunpack.c.l.s4 1966171168
        %v1046 = vunpack.c.0.s8 %v1045
        %v1047 = vlaneseq
        %v1048 = vshrl.u32 %v1047, 7
        %v1049 = vsub.s32 %v1046, %v1048
        %v1050 = vrot.slane %v1043, %v1049
        %v1052 = vunpack.c.l.s4 1966171168
        %v1053 = vunpack.c.0.s8 %v1052
        %v1054 = vlaneseq
        %v1055 = vshrl.u32 %v1054, 7
        %v1056 = vsub.s32 %v1053, %v1055
        %v1057 = vrot.slane %v1050, %v1056
        %v1059 = vadd.f32 %v1006, %v1057
        %1060 = vst.msk [vmem:[#allocation2 + $0x8] sm:$0x3] %vm571, %v1059
        %p1061 = scmp.eq.s32.totalorder %s27, 3
        // Predicated region
        $region61: #{tpu_custom_call.1} parent=43 // pred_check
          %p1062 = pneg %p1061
        $region62: #{tpu_custom_call.1} parent=43 // pred_check_branch
          %1064 = sbr.rel (%p1062) target = $region64
        $region63: #{tpu_custom_call.1} parent=43 // pred_region
          %v1065 = vld [vmem:[#allocation2] sm:$0xff]
          %v1066 = vld [vmem:[#allocation2 + $0x8] sm:$0x3]
          %s1067 = sld [smem:[#allocation3 + $0x2]]
          %v1068 = vstv %s1067
          %v1069 = vmul.f32 %v1065, %v1068
          %v1070 = vmul.f32 %v1066, %v1068
          %v1071 = vld [vmem:[%s5] sm:$0xff]
          %v1072 = vld [vmem:[%s5 + $0x8] sm:$0x3]
          %v1073 = vmul.f32 %v1069, %v1071
          %v1074 = vmul.f32 %v1070, %v1072
          %v1077 = vlaneseq
          %v1078 = vshrl.u32 %v1077, 7
          %v1079 = vsub.s32 0, %v1078
          %v1080 = vrot.slane %v1073, %v1079
          %v1081 = vlaneseq
          %v1082 = vshrl.u32 %v1081, 7
          %v1083 = vsub.s32 1, %v1082
          %v1084 = vrot.slane %v1073, %v1083
          %v1085 = vlaneseq
          %v1086 = vshrl.u32 %v1085, 7
          %v1087 = vsub.s32 2, %v1086
          %v1088 = vrot.slane %v1073, %v1087
          %v1089 = vlaneseq
          %v1090 = vshrl.u32 %v1089, 7
          %v1091 = vsub.s32 3, %v1090
          %v1092 = vrot.slane %v1073, %v1091
          %v1093 = vlaneseq
          %v1094 = vshrl.u32 %v1093, 7
          %v1095 = vsub.s32 4, %v1094
          %v1096 = vrot.slane %v1073, %v1095
          %v1097 = vlaneseq
          %v1098 = vshrl.u32 %v1097, 7
          %v1099 = vsub.s32 5, %v1098
          %v1100 = vrot.slane %v1073, %v1099
          %v1101 = vlaneseq
          %v1102 = vshrl.u32 %v1101, 7
          %v1103 = vsub.s32 6, %v1102
          %v1104 = vrot.slane %v1073, %v1103
          %v1105 = vlaneseq
          %v1106 = vshrl.u32 %v1105, 7
          %v1107 = vsub.s32 7, %v1106
          %v1108 = vrot.slane %v1073, %v1107
          %v1109 = vlaneseq
          %v1110 = vshrl.u32 %v1109, 7
          %v1111 = vsub.s32 0, %v1110
          %v1112 = vrot.slane %v1074, %v1111
          %v1113 = vlaneseq
          %v1114 = vshrl.u32 %v1113, 7
          %v1115 = vsub.s32 1, %v1114
          %v1116 = vrot.slane %v1074, %v1115
          %vm1127 = vcmask 1040384
          %v1128 = vsel %vm1127, %v1080, 0.0
          %v1129 = vsel %vm1127, %v1084, 0.0
          %v1130 = vadd.f32 %v1128, %v1129
          %v1131 = vsel %vm1127, %v1088, 0.0
          %v1132 = vadd.f32 %v1130, %v1131
          %v1133 = vsel %vm1127, %v1092, 0.0
          %v1134 = vadd.f32 %v1132, %v1133
          %v1135 = vsel %vm1127, %v1096, 0.0
          %v1136 = vadd.f32 %v1134, %v1135
          %v1137 = vsel %vm1127, %v1100, 0.0
          %v1138 = vadd.f32 %v1136, %v1137
          %v1139 = vsel %vm1127, %v1104, 0.0
          %v1140 = vadd.f32 %v1138, %v1139
          %v1141 = vsel %vm1127, %v1108, 0.0
          %v1142 = vadd.f32 %v1140, %v1141
          %v1143 = vsel %vm1127, %v1112, 0.0
          %v1144 = vadd.f32 %v1142, %v1143
          %v1145 = vsel %vm1127, %v1116, 0.0
          %v1146 = vadd.f32 %v1144, %v1145
          %1147 = vadd.xlane.f32.xlu0 %v1146
          %v1148 = vpop.xlane.xlu0 %1147
          %s1149 = sld [smem:[#allocation3 + $0x1]]
          %v1150 = vstv %s1149
          %v1151 = vadd.f32 %v1148, %v1150
          %vm1152 = vcmask 0
          %1153 = vst.msk [vmem:[%s350] sm:$0x1] %vm1152, %v1151
          %s1154 = sld [smem:[#allocation3]]
          %s1155 = sld [smem:[#allocation6 + %s26]]
          %s1156 = smul.f32 %s1154, %s1155
          %v1157 = vsub.f32 0.0, %v1151
          %v1158 = vmax.f32 %v1157, 0.0
          %v1159 = vand.u32 2147483647, %v1157
          %v1160 = vsub.f32 0.0, %v1159
          %v1161 = vmul.f32 %v1160, 1.442695
          %v1162 = vpow.pop %v1161
          %v1163 = vadd.f32 %v1162, 1.0
          %v1164 = vlog2.pop %v1163
          %v1165 = vmul.f32 %v1164, 0.6931472
          %v1166 = vmul.f32 -0.5, %v1162
          %v1167 = vadd.f32 %v1166, 1.0
          %v1168 = vmul.f32 %v1167, %v1162
          %v1169 = vand.u32 2147483647, %v1162
          %vm1170 = vcmp.lt.f32.partialorder %v1169, 0.0004427343
          %v1171 = vsel %vm1170, %v1168, %v1165
          %v1172 = vadd.f32 %v1158, %v1171
          %v1173 = vstv %s1156
          %v1174 = vmul.f32 %v1173, %v1172
          %s1175 = ssub.f32 1.0, %s1155
          %v1176 = vmax.f32 %v1151, 0.0
          %v1177 = vand.u32 2147483647, %v1151
          %v1178 = vsub.f32 0.0, %v1177
          %v1179 = vmul.f32 %v1178, 1.442695
          %v1180 = vpow.pop %v1179
          %v1181 = vadd.f32 %v1180, 1.0
          %v1182 = vlog2.pop %v1181
          %v1183 = vmul.f32 %v1182, 0.6931472
          %v1184 = vmul.f32 -0.5, %v1180
          %v1185 = vadd.f32 %v1184, 1.0
          %v1186 = vmul.f32 %v1185, %v1180
          %v1187 = vand.u32 2147483647, %v1180
          %vm1188 = vcmp.lt.f32.partialorder %v1187, 0.0004427343
          %v1189 = vsel %vm1188, %v1186, %v1183
          %v1190 = vadd.f32 %v1176, %v1189
          %v1191 = vstv %s1175
          %v1192 = vmul.f32 %v1191, %v1190
          %v1193 = vadd.f32 %v1174, %v1192
          %1194 = vst.msk [vmem:[%s353] sm:$0x1] %vm1152, %v1193
        $region64: #{tpu_custom_call.1} parent=43 // pred_fallthru
          _
        %p1195 = scmp.lt.s32.totalorder %s26, 1
        %s1196 = scalar_select %p1195, %s26, 1
        %s1197 = scalar_lea.vmem %s6, %s1196
        %p1198 = scmp.lt.s32.totalorder %s26, 1
        %s1199 = scalar_select %p1198, %s26, 1
        %s1200 = scalar_lea.vmem %s7, %s1199
        // Predicated region
        $region65: #{tpu_custom_call.1} parent=43 // pred_check
          %p1201 = pneg %p185
        $region66: #{tpu_custom_call.1} parent=43 // pred_check_branch
          %1203 = sbr.rel (%p1201) target = $region68
        $region67: #{tpu_custom_call.1} parent=43 // pred_region
          _
        $region68: #{tpu_custom_call.1} parent=43 // pred_fallthru
          _
        // Predicated region
        $region69: #{tpu_custom_call.1} parent=43 // pred_check
          %p1204 = pneg %p211
        $region70: #{tpu_custom_call.1} parent=43 // pred_check_branch
          %1206 = sbr.rel (%p1204) target = $region72
        $region71: #{tpu_custom_call.1} parent=43 // pred_region
          _
        $region72: #{tpu_custom_call.1} parent=43 // pred_fallthru
          _
      $region44: #{tpu_custom_call.1} parent=5 // pred_fallthru
        _
      %p1207 = scmp.le.s32.totalorder 2, %s17
      // Predicated region
      $region73: #{tpu_custom_call.1} parent=5 // pred_check
        %p1208 = pneg %p1207
      $region74: #{tpu_custom_call.1} parent=5 // pred_check_branch
        %1210 = sbr.rel (%p1208) target = $region76
      $region75: #{tpu_custom_call.1} parent=5 // pred_region
        %s1211 = ssub.s32 %s17, 2
        // Predicated region
        $region77: #{tpu_custom_call.1} parent=75 // pred_check
          %p1212 = pneg %p191
        $region78: #{tpu_custom_call.1} parent=75 // pred_check_branch
          %1214 = sbr.rel (%p1212) target = $region80
        $region79: #{tpu_custom_call.1} parent=75 // pred_region
          %p1215 = scmp.lt.s32.totalorder %s28, 1
          %s1216 = scalar_select %p1215, %s28, 1
          %s1217 = scalar_lea.vmem %s6, %s1216
        $region80: #{tpu_custom_call.1} parent=75 // pred_fallthru
          _
        // Predicated region
        $region81: #{tpu_custom_call.1} parent=75 // pred_check
          %p1218 = pneg %p217
        $region82: #{tpu_custom_call.1} parent=75 // pred_check_branch
          %1220 = sbr.rel (%p1218) target = $region84
        $region83: #{tpu_custom_call.1} parent=75 // pred_region
          %p1221 = scmp.lt.s32.totalorder %s28, 1
          %s1222 = scalar_select %p1221, %s28, 1
          %s1223 = scalar_lea.vmem %s7, %s1222
        $region84: #{tpu_custom_call.1} parent=75 // pred_fallthru
          _
      $region76: #{tpu_custom_call.1} parent=5 // pred_fallthru
        _
    $region6: #{tpu_custom_call.1} parent=1 // loop_footer
      %s21 = sadd.s32 1, %s17
    $region7: #{tpu_custom_call.1} parent=1 // loop_footer_branch
      %16 = sbr.rel target = $region3
    $region8: #{tpu_custom_call.1} parent=1 // loop_exit
      _
    %1224 = vsyncpa [#allocation4], 1
    %s1225 = scalar_lea.sflag [#allocation4], 1
    %1226 = vsyncpa %s1225, 1
    %1227 = vsyncpa [#allocation5], 1
    %s1228 = scalar_lea.sflag [#allocation5], 1
    %1229 = vsyncpa %s1228, 1
    %1230 = vsyncpa [#allocation7], 1

</llo_original>
